<compile_context>
chip_gen: v7x
topology: tpu7x:2x2x1
jax: 0.10.0
libtpu: 0.0.40
codegen_flags: <defaults>
</compile_context>

<pallas_src>
import functools
import math

import jax
import jax.numpy as jnp
from jax import lax
from jax.experimental import pallas as pl
from jax.experimental.pallas import tpu as pltpu


# ------------------------------- kernel ---------------------------------------

def _mha_kernel(*refs, h, d_k, scale, has_mask):
    if has_mask:
        (q_in_ref, k_in_ref, v_in_ref, mask_ref,
         wq_ref, bq_ref, wk_ref, bk_ref, wv_ref, bv_ref, wo_ref, bo_ref,
         out_ref, attn_ref) = refs
    else:
        (q_in_ref, k_in_ref, v_in_ref,
         wq_ref, bq_ref, wk_ref, bk_ref, wv_ref, bv_ref, wo_ref, bo_ref,
         out_ref, attn_ref) = refs
        mask_ref = None

    xq = q_in_ref[0].astype(jnp.float32)          # (Sq, d_model)
    xk = k_in_ref[0].astype(jnp.float32)          # (Skv, d_model)
    xv = v_in_ref[0].astype(jnp.float32)          # (Skv, d_model)

    # Input projections (MXU), biases broadcast over rows.
    q = jnp.dot(xq, wq_ref[...], preferred_element_type=jnp.float32) + bq_ref[...]
    k = jnp.dot(xk, wk_ref[...], preferred_element_type=jnp.float32) + bk_ref[...]
    v = jnp.dot(xv, wv_ref[...], preferred_element_type=jnp.float32) + bv_ref[...]

    s_q = q.shape[0]
    s_kv = k.shape[0]
    d_model = q.shape[1]

    # Output accumulator starts at the output-projection bias.
    out_acc = jnp.zeros((s_q, d_model), jnp.float32) + bo_ref[...]
    attn_acc = jnp.zeros((s_q, s_kv), jnp.float32)

    if has_mask:
        neg = jnp.float32(-1e9)
        mask_is_zero = mask_ref[0] == 0           # (Sq, Skv)

    # Static unrolled loop over heads: plain 2-D matmuls only.
    for i in range(h):
        qh = q[:, i * d_k:(i + 1) * d_k]          # (Sq, d_k)
        kh = k[:, i * d_k:(i + 1) * d_k]          # (Skv, d_k)
        vh = v[:, i * d_k:(i + 1) * d_k]          # (Skv, d_k)

        # scores = qh @ kh^T / sqrt(d_k)   (contract last dims of both -> MXU native)
        scores = lax.dot_general(
            qh, kh, (((1,), (1,)), ((), ())),
            preferred_element_type=jnp.float32) * scale          # (Sq, Skv)
        if has_mask:
            scores = jnp.where(mask_is_zero, neg, scores)

        # softmax over keys (row-wise, numerically stable)
        m = jnp.max(scores, axis=-1, keepdims=True)
        e = jnp.exp(scores - m)
        p = e / jnp.sum(e, axis=-1, keepdims=True)                # (Sq, Skv)
        # TODO(synk): training-mode dropout on p would go here.

        attn_acc = attn_acc + p

        ctx = jnp.dot(p, vh, preferred_element_type=jnp.float32)  # (Sq, d_k)
        # Output projection, per-head slice of Wo (rows i*d_k : (i+1)*d_k).
        out_acc = out_acc + jnp.dot(ctx, wo_ref[i * d_k:(i + 1) * d_k, :],
                                    preferred_element_type=jnp.float32)

    out_ref[0] = out_acc.astype(out_ref.dtype)
    attn_ref[0] = (attn_acc * (1.0 / h)).astype(attn_ref.dtype)


# ------------------------------ wrapper ----------------------------------------

def multi_headed_attention(query, key, value, params, mask=None, *, h):
    """query/key/value: (B, S, d_model).  mask: (B, Sq, Skv) or None.

    Returns (output (B, Sq, d_model), mean-over-heads attention (B, Sq, Skv)),
    matching MultiHeadedAttention.forward in inference mode.
    """
    wq, bq, wk, bk, wv, bv, wo, bo = params
    B, Sq, d_model = query.shape
    Skv = key.shape[1]
    assert d_model % h == 0
    d_k = d_model // h
    scale = 1.0 / math.sqrt(d_k)
    has_mask = mask is not None

    kernel = functools.partial(_mha_kernel, h=h, d_k=d_k, scale=scale,
                               has_mask=has_mask)

    in_specs = [
        pl.BlockSpec((1, Sq, d_model), lambda b: (b, 0, 0)),
        pl.BlockSpec((1, Skv, d_model), lambda b: (b, 0, 0)),
        pl.BlockSpec((1, Skv, d_model), lambda b: (b, 0, 0)),
    ]
    inputs = [query, key, value]
    if has_mask:
        in_specs.append(pl.BlockSpec((1, Sq, Skv), lambda b: (b, 0, 0)))
        inputs.append(mask.astype(jnp.int32))

    w_spec = pl.BlockSpec((d_model, d_model), lambda b: (0, 0))   # fetched once
    b_spec = pl.BlockSpec((1, d_model), lambda b: (0, 0))
    in_specs += [w_spec, b_spec] * 4
    inputs += [wq, bq.reshape(1, d_model), wk, bk.reshape(1, d_model),
               wv, bv.reshape(1, d_model), wo, bo.reshape(1, d_model)]

    out_shape = (jax.ShapeDtypeStruct((B, Sq, d_model), query.dtype),
                 jax.ShapeDtypeStruct((B, Sq, Skv), jnp.float32))
    out_specs = (pl.BlockSpec((1, Sq, d_model), lambda b: (b, 0, 0)),
                 pl.BlockSpec((1, Sq, Skv), lambda b: (b, 0, 0)))

    # Cost hint so XLA schedules surrounding ops around the fused call.
    flops = (2 * B * Sq * d_model * d_model            # Wq
             + 2 * B * Skv * d_model * d_model * 2     # Wk, Wv
             + 2 * B * Sq * d_model * d_model          # Wo
             + 2 * 2 * B * h * Sq * Skv * d_k)         # scores + context
    nbytes = 4 * (B * (Sq + 2 * Skv) * d_model
                  + 4 * (d_model * d_model + d_model)
                  + B * Sq * d_model + B * Sq * Skv
                  + (B * Sq * Skv if has_mask else 0))

    out, attn_mean = pl.pallas_call(
        kernel,
        out_shape=out_shape,
        grid_spec=pltpu.PrefetchScalarGridSpec(
            num_scalar_prefetch=0,
            grid=(B,),
            in_specs=in_specs,
            out_specs=out_specs,
        ),
        compiler_params=pltpu.CompilerParams(
            dimension_semantics=("parallel",),
            vmem_limit_bytes=32 * 1024 * 1024,
        ),
        cost_estimate=pl.CostEstimate(
            flops=int(flops),
            transcendentals=int(B * h * Sq * Skv),
            bytes_accessed=int(nbytes)),
    )(*inputs)
    return out, attn_mean


# --------------------------- params / reference --------------------------------

def init_params(key, d_model):
    """Deterministic synthetic weights, (in, out) layout (= torch Linear W^T)."""
    ks = jax.random.split(key, 8)
    bound = 1.0 / math.sqrt(d_model)

    def lin(kw, kb):
        w = jax.random.uniform(kw, (d_model, d_model), jnp.float32, -bound, bound)
        b = jax.random.uniform(kb, (d_model,), jnp.float32, -bound, bound)
        return w, b

    wq, bq = lin(ks[0], ks[1])
    wk, bk = lin(ks[2], ks[3])
    wv, bv = lin(ks[4], ks[5])
    wo, bo = lin(ks[6], ks[7])
    return (wq, bq, wk, bk, wv, bv, wo, bo)


def mha_reference(query, key, value, params, mask, h):
    """Pure-JAX reference (mirrors the PyTorch module in eval mode)."""
    wq, bq, wk, bk, wv, bv, wo, bo = params
    B, Sq, d_model = query.shape
    d_k = d_model // h

    def split_heads(x):
        return x.reshape(B, -1, h, d_k).transpose(0, 2, 1, 3)

    q = split_heads(query @ wq + bq)
    k = split_heads(key @ wk + bk)
    v = split_heads(value @ wv + bv)
    scores = jnp.einsum('bhqd,bhkd->bhqk', q, k) / math.sqrt(d_k)
    if mask is not None:
        scores = jnp.where(mask[:, None, :, :] == 0, -1e9, scores)
    p = jax.nn.softmax(scores, axis=-1)
    ctx = jnp.einsum('bhqk,bhkd->bhqd', p, v)
    ctx = ctx.transpose(0, 2, 1, 3).reshape(B, Sq, d_model)
    return ctx @ wo + bo, p.mean(axis=1)


# ----------------------------------- main ---------------------------------------

if __name__ == "__main__":
    B, S, d_model, h = 2, 8, 32, 4

    root = jax.random.PRNGKey(0)
    kq, kk, kv, kp = jax.random.split(root, 4)
    query = jax.random.normal(kq, (B, S, d_model), jnp.float32)
    key_in = jax.random.normal(kk, (B, S, d_model), jnp.float32)
    value = jax.random.normal(kv, (B, S, d_model), jnp.float32)
    params = init_params(kp, d_model)

    # padding-style mask: batch 1 cannot attend to its last two key positions
    mask = jnp.ones((B, S, S), jnp.int32).at[1, :, -2:].set(0)

    fwd = jax.jit(functools.partial(multi_headed_attention, h=h))
    out, attn_mean = fwd(query, key_in, value, params, mask)
    jax.block_until_ready((out, attn_mean))

    ref_out, ref_attn = mha_reference(query, key_in, value, params, mask, h)

    assert out.shape == (B, S, d_model), out.shape
    assert attn_mean.shape == (B, S, S), attn_mean.shape
    assert bool(jnp.isfinite(out).all()) and bool(jnp.isfinite(attn_mean).all())
    assert bool(jnp.allclose(out, ref_out, atol=1e-4, rtol=1e-3))
    assert bool(jnp.allclose(attn_mean, ref_attn, atol=1e-4, rtol=1e-3))
    print("KERNEL_OK")
</pallas_src>

<mosaic_0001>
module attributes {stable_mosaic.version = 11 : i64} {
  func.func @_mha_kernel(%arg0: i32, %arg1: memref<1x8x32xf32, #tpu.memory_space<vmem>>, %arg2: memref<1x8x32xf32, #tpu.memory_space<vmem>>, %arg3: memref<1x8x32xf32, #tpu.memory_space<vmem>>, %arg4: memref<1x8x8xi32, #tpu.memory_space<vmem>>, %arg5: memref<32x32xf32, #tpu.memory_space<vmem>>, %arg6: memref<1x32xf32, #tpu.memory_space<vmem>>, %arg7: memref<32x32xf32, #tpu.memory_space<vmem>>, %arg8: memref<1x32xf32, #tpu.memory_space<vmem>>, %arg9: memref<32x32xf32, #tpu.memory_space<vmem>>, %arg10: memref<1x32xf32, #tpu.memory_space<vmem>>, %arg11: memref<32x32xf32, #tpu.memory_space<vmem>>, %arg12: memref<1x32xf32, #tpu.memory_space<vmem>>, %arg13: memref<1x8x32xf32, #tpu.memory_space<vmem>>, %arg14: memref<1x8x8xf32, #tpu.memory_space<vmem>>) attributes {dimension_semantics = [#tpu.dimension_semantics<parallel>], iteration_bounds = array<i64: 2>, scalar_prefetch = 0 : i64, scratch_operands = 0 : i64, tpu.core_type = #tpu.core_type<tc>, window_params = [{transform_indices = @transform_0, window_bounds = array<i64: 1, 8, 32>}, {transform_indices = @transform_1, window_bounds = array<i64: 1, 8, 32>}, {transform_indices = @transform_2, window_bounds = array<i64: 1, 8, 32>}, {transform_indices = @transform_3, window_bounds = array<i64: 1, 8, 8>}, {pipeline_mode = #tpu.pipeline_mode<synchronous>, transform_indices = @transform_4, window_bounds = array<i64: 32, 32>}, {pipeline_mode = #tpu.pipeline_mode<synchronous>, transform_indices = @transform_5, window_bounds = array<i64: 1, 32>}, {pipeline_mode = #tpu.pipeline_mode<synchronous>, transform_indices = @transform_6, window_bounds = array<i64: 32, 32>}, {pipeline_mode = #tpu.pipeline_mode<synchronous>, transform_indices = @transform_7, window_bounds = array<i64: 1, 32>}, {pipeline_mode = #tpu.pipeline_mode<synchronous>, transform_indices = @transform_8, window_bounds = array<i64: 32, 32>}, {pipeline_mode = #tpu.pipeline_mode<synchronous>, transform_indices = @transform_9, window_bounds = array<i64: 1, 32>}, {pipeline_mode = #tpu.pipeline_mode<synchronous>, transform_indices = @transform_10, window_bounds = array<i64: 32, 32>}, {pipeline_mode = #tpu.pipeline_mode<synchronous>, transform_indices = @transform_11, window_bounds = array<i64: 1, 32>}, {transform_indices = @transform_12, window_bounds = array<i64: 1, 8, 32>}, {transform_indices = @transform_13, window_bounds = array<i64: 1, 8, 8>}]} {
    %c0 = arith.constant 0 : index
    %c0_0 = arith.constant 0 : index
    %c0_1 = arith.constant 0 : index
    %0 = vector.load %arg1[%c0, %c0_0, %c0_1] : memref<1x8x32xf32, #tpu.memory_space<vmem>>, vector<1x8x32xf32>
    %1 = vector.shape_cast %0 : vector<1x8x32xf32> to vector<8x32xf32>
    %c0_2 = arith.constant 0 : index
    %c0_3 = arith.constant 0 : index
    %c0_4 = arith.constant 0 : index
    %2 = vector.load %arg2[%c0_2, %c0_3, %c0_4] : memref<1x8x32xf32, #tpu.memory_space<vmem>>, vector<1x8x32xf32>
    %3 = vector.shape_cast %2 : vector<1x8x32xf32> to vector<8x32xf32>
    %c0_5 = arith.constant 0 : index
    %c0_6 = arith.constant 0 : index
    %c0_7 = arith.constant 0 : index
    %4 = vector.load %arg3[%c0_5, %c0_6, %c0_7] : memref<1x8x32xf32, #tpu.memory_space<vmem>>, vector<1x8x32xf32>
    %5 = vector.shape_cast %4 : vector<1x8x32xf32> to vector<8x32xf32>
    %c0_8 = arith.constant 0 : index
    %c0_9 = arith.constant 0 : index
    %6 = vector.load %arg5[%c0_8, %c0_9] : memref<32x32xf32, #tpu.memory_space<vmem>>, vector<32x32xf32>
    %cst = arith.constant dense<0.000000e+00> : vector<8x32xf32>
    %7 = tpu.matmul %1, %6, %cst {dimension_numbers = #tpu.dot_dimension_numbers<[1], [0], [0], [1], [0, 0, 1, 1], [], []>} : vector<8x32xf32>, vector<32x32xf32>, vector<8x32xf32> -> vector<8x32xf32>
    %c0_10 = arith.constant 0 : index
    %c0_11 = arith.constant 0 : index
    %8 = vector.load %arg6[%c0_10, %c0_11] : memref<1x32xf32, #tpu.memory_space<vmem>>, vector<1x32xf32>
    %9 = vector.broadcast %8 : vector<1x32xf32> to vector<8x32xf32>
    %10 = arith.addf %7, %9 : vector<8x32xf32>
    %c0_12 = arith.constant 0 : index
    %c0_13 = arith.constant 0 : index
    %11 = vector.load %arg7[%c0_12, %c0_13] : memref<32x32xf32, #tpu.memory_space<vmem>>, vector<32x32xf32>
    %cst_14 = arith.constant dense<0.000000e+00> : vector<8x32xf32>
    %12 = tpu.matmul %3, %11, %cst_14 {dimension_numbers = #tpu.dot_dimension_numbers<[1], [0], [0], [1], [0, 0, 1, 1], [], []>} : vector<8x32xf32>, vector<32x32xf32>, vector<8x32xf32> -> vector<8x32xf32>
    %c0_15 = arith.constant 0 : index
    %c0_16 = arith.constant 0 : index
    %13 = vector.load %arg8[%c0_15, %c0_16] : memref<1x32xf32, #tpu.memory_space<vmem>>, vector<1x32xf32>
    %14 = vector.broadcast %13 : vector<1x32xf32> to vector<8x32xf32>
    %15 = arith.addf %12, %14 : vector<8x32xf32>
    %c0_17 = arith.constant 0 : index
    %c0_18 = arith.constant 0 : index
    %16 = vector.load %arg9[%c0_17, %c0_18] : memref<32x32xf32, #tpu.memory_space<vmem>>, vector<32x32xf32>
    %cst_19 = arith.constant dense<0.000000e+00> : vector<8x32xf32>
    %17 = tpu.matmul %5, %16, %cst_19 {dimension_numbers = #tpu.dot_dimension_numbers<[1], [0], [0], [1], [0, 0, 1, 1], [], []>} : vector<8x32xf32>, vector<32x32xf32>, vector<8x32xf32> -> vector<8x32xf32>
    %c0_20 = arith.constant 0 : index
    %c0_21 = arith.constant 0 : index
    %18 = vector.load %arg10[%c0_20, %c0_21] : memref<1x32xf32, #tpu.memory_space<vmem>>, vector<1x32xf32>
    %19 = vector.broadcast %18 : vector<1x32xf32> to vector<8x32xf32>
    %20 = arith.addf %17, %19 : vector<8x32xf32>
    %cst_22 = arith.constant 0.000000e+00 : f32
    %21 = vector.broadcast %cst_22 : f32 to vector<8x32xf32>
    %c0_23 = arith.constant 0 : index
    %c0_24 = arith.constant 0 : index
    %22 = vector.load %arg12[%c0_23, %c0_24] : memref<1x32xf32, #tpu.memory_space<vmem>>, vector<1x32xf32>
    %23 = vector.broadcast %22 : vector<1x32xf32> to vector<8x32xf32>
    %24 = arith.addf %21, %23 : vector<8x32xf32>
    %cst_25 = arith.constant 0.000000e+00 : f32
    %25 = vector.broadcast %cst_25 : f32 to vector<8x8xf32>
    %c0_26 = arith.constant 0 : index
    %c0_27 = arith.constant 0 : index
    %c0_28 = arith.constant 0 : index
    %26 = vector.load %arg4[%c0_26, %c0_27, %c0_28] : memref<1x8x8xi32, #tpu.memory_space<vmem>>, vector<1x8x8xi32>
    %27 = vector.shape_cast %26 : vector<1x8x8xi32> to vector<8x8xi32>
    %c0_i32 = arith.constant 0 : i32
    %28 = vector.broadcast %c0_i32 : i32 to vector<8x8xi32>
    %29 = arith.cmpi eq, %27, %28 : vector<8x8xi32>
    %30 = vector.extract_strided_slice %10 {offsets = [0, 0], sizes = [8, 8], strides = [1, 1]} : vector<8x32xf32> to vector<8x8xf32>
    %31 = vector.extract_strided_slice %15 {offsets = [0, 0], sizes = [8, 8], strides = [1, 1]} : vector<8x32xf32> to vector<8x8xf32>
    %32 = vector.extract_strided_slice %20 {offsets = [0, 0], sizes = [8, 8], strides = [1, 1]} : vector<8x32xf32> to vector<8x8xf32>
    %cst_29 = arith.constant dense<0.000000e+00> : vector<8x8xf32>
    %33 = tpu.matmul %30, %31, %cst_29 {dimension_numbers = #tpu.dot_dimension_numbers<[1], [1], [0], [0], [0, 0, 1, 0], [], []>} : vector<8x8xf32>, vector<8x8xf32>, vector<8x8xf32> -> vector<8x8xf32>
    %cst_30 = arith.constant 0.353553385 : f32
    %34 = vector.broadcast %cst_30 : f32 to vector<8x8xf32>
    %35 = arith.mulf %33, %34 : vector<8x8xf32>
    %cst_31 = arith.constant -1.000000e+09 : f32
    %36 = vector.broadcast %cst_31 : f32 to vector<8x8xf32>
    %37 = arith.select %29, %36, %35 : vector<8x8xi1>, vector<8x8xf32>
    %cst_32 = arith.constant dense<0xFF800000> : vector<8xf32>
    %38 = vector.multi_reduction <maximumf>, %37, %cst_32 [1] : vector<8x8xf32> to vector<8xf32>
    %39 = vector.shape_cast %38 : vector<8xf32> to vector<8x1xf32>
    %40 = vector.broadcast %39 : vector<8x1xf32> to vector<8x8xf32>
    %41 = arith.subf %37, %40 : vector<8x8xf32>
    %42 = math.exp %41 : vector<8x8xf32>
    %cst_33 = arith.constant dense<0.000000e+00> : vector<8xf32>
    %43 = vector.multi_reduction <add>, %42, %cst_33 [1] : vector<8x8xf32> to vector<8xf32>
    %44 = vector.shape_cast %43 : vector<8xf32> to vector<8x1xf32>
    %45 = vector.broadcast %44 : vector<8x1xf32> to vector<8x8xf32>
    %46 = arith.divf %42, %45 : vector<8x8xf32>
    %47 = arith.addf %25, %46 : vector<8x8xf32>
    %cst_34 = arith.constant dense<0.000000e+00> : vector<8x8xf32>
    %48 = tpu.matmul %46, %32, %cst_34 {dimension_numbers = #tpu.dot_dimension_numbers<[1], [0], [0], [1], [0, 0, 1, 1], [], []>} : vector<8x8xf32>, vector<8x8xf32>, vector<8x8xf32> -> vector<8x8xf32>
    %c0_35 = arith.constant 0 : index
    %c0_36 = arith.constant 0 : index
    %49 = vector.load %arg11[%c0_35, %c0_36] : memref<32x32xf32, #tpu.memory_space<vmem>>, vector<8x32xf32>
    %cst_37 = arith.constant dense<0.000000e+00> : vector<8x32xf32>
    %50 = tpu.matmul %48, %49, %cst_37 {dimension_numbers = #tpu.dot_dimension_numbers<[1], [0], [0], [1], [0, 0, 1, 1], [], []>} : vector<8x8xf32>, vector<8x32xf32>, vector<8x32xf32> -> vector<8x32xf32>
    %51 = arith.addf %24, %50 : vector<8x32xf32>
    %52 = vector.extract_strided_slice %10 {offsets = [0, 8], sizes = [8, 8], strides = [1, 1]} : vector<8x32xf32> to vector<8x8xf32>
    %53 = vector.extract_strided_slice %15 {offsets = [0, 8], sizes = [8, 8], strides = [1, 1]} : vector<8x32xf32> to vector<8x8xf32>
    %54 = vector.extract_strided_slice %20 {offsets = [0, 8], sizes = [8, 8], strides = [1, 1]} : vector<8x32xf32> to vector<8x8xf32>
    %cst_38 = arith.constant dense<0.000000e+00> : vector<8x8xf32>
    %55 = tpu.matmul %52, %53, %cst_38 {dimension_numbers = #tpu.dot_dimension_numbers<[1], [1], [0], [0], [0, 0, 1, 0], [], []>} : vector<8x8xf32>, vector<8x8xf32>, vector<8x8xf32> -> vector<8x8xf32>
    %cst_39 = arith.constant 0.353553385 : f32
    %56 = vector.broadcast %cst_39 : f32 to vector<8x8xf32>
    %57 = arith.mulf %55, %56 : vector<8x8xf32>
    %cst_40 = arith.constant -1.000000e+09 : f32
    %58 = vector.broadcast %cst_40 : f32 to vector<8x8xf32>
    %59 = arith.select %29, %58, %57 : vector<8x8xi1>, vector<8x8xf32>
    %cst_41 = arith.constant dense<0xFF800000> : vector<8xf32>
    %60 = vector.multi_reduction <maximumf>, %59, %cst_41 [1] : vector<8x8xf32> to vector<8xf32>
    %61 = vector.shape_cast %60 : vector<8xf32> to vector<8x1xf32>
    %62 = vector.broadcast %61 : vector<8x1xf32> to vector<8x8xf32>
    %63 = arith.subf %59, %62 : vector<8x8xf32>
    %64 = math.exp %63 : vector<8x8xf32>
    %cst_42 = arith.constant dense<0.000000e+00> : vector<8xf32>
    %65 = vector.multi_reduction <add>, %64, %cst_42 [1] : vector<8x8xf32> to vector<8xf32>
    %66 = vector.shape_cast %65 : vector<8xf32> to vector<8x1xf32>
    %67 = vector.broadcast %66 : vector<8x1xf32> to vector<8x8xf32>
    %68 = arith.divf %64, %67 : vector<8x8xf32>
    %69 = arith.addf %47, %68 : vector<8x8xf32>
    %cst_43 = arith.constant dense<0.000000e+00> : vector<8x8xf32>
    %70 = tpu.matmul %68, %54, %cst_43 {dimension_numbers = #tpu.dot_dimension_numbers<[1], [0], [0], [1], [0, 0, 1, 1], [], []>} : vector<8x8xf32>, vector<8x8xf32>, vector<8x8xf32> -> vector<8x8xf32>
    %c8 = arith.constant 8 : index
    %c0_44 = arith.constant 0 : index
    %71 = vector.load %arg11[%c8, %c0_44] : memref<32x32xf32, #tpu.memory_space<vmem>>, vector<8x32xf32>
    %cst_45 = arith.constant dense<0.000000e+00> : vector<8x32xf32>
    %72 = tpu.matmul %70, %71, %cst_45 {dimension_numbers = #tpu.dot_dimension_numbers<[1], [0], [0], [1], [0, 0, 1, 1], [], []>} : vector<8x8xf32>, vector<8x32xf32>, vector<8x32xf32> -> vector<8x32xf32>
    %73 = arith.addf %51, %72 : vector<8x32xf32>
    %74 = vector.extract_strided_slice %10 {offsets = [0, 16], sizes = [8, 8], strides = [1, 1]} : vector<8x32xf32> to vector<8x8xf32>
    %75 = vector.extract_strided_slice %15 {offsets = [0, 16], sizes = [8, 8], strides = [1, 1]} : vector<8x32xf32> to vector<8x8xf32>
    %76 = vector.extract_strided_slice %20 {offsets = [0, 16], sizes = [8, 8], strides = [1, 1]} : vector<8x32xf32> to vector<8x8xf32>
    %cst_46 = arith.constant dense<0.000000e+00> : vector<8x8xf32>
    %77 = tpu.matmul %74, %75, %cst_46 {dimension_numbers = #tpu.dot_dimension_numbers<[1], [1], [0], [0], [0, 0, 1, 0], [], []>} : vector<8x8xf32>, vector<8x8xf32>, vector<8x8xf32> -> vector<8x8xf32>
    %cst_47 = arith.constant 0.353553385 : f32
    %78 = vector.broadcast %cst_47 : f32 to vector<8x8xf32>
    %79 = arith.mulf %77, %78 : vector<8x8xf32>
    %cst_48 = arith.constant -1.000000e+09 : f32
    %80 = vector.broadcast %cst_48 : f32 to vector<8x8xf32>
    %81 = arith.select %29, %80, %79 : vector<8x8xi1>, vector<8x8xf32>
    %cst_49 = arith.constant dense<0xFF800000> : vector<8xf32>
    %82 = vector.multi_reduction <maximumf>, %81, %cst_49 [1] : vector<8x8xf32> to vector<8xf32>
    %83 = vector.shape_cast %82 : vector<8xf32> to vector<8x1xf32>
    %84 = vector.broadcast %83 : vector<8x1xf32> to vector<8x8xf32>
    %85 = arith.subf %81, %84 : vector<8x8xf32>
    %86 = math.exp %85 : vector<8x8xf32>
    %cst_50 = arith.constant dense<0.000000e+00> : vector<8xf32>
    %87 = vector.multi_reduction <add>, %86, %cst_50 [1] : vector<8x8xf32> to vector<8xf32>
    %88 = vector.shape_cast %87 : vector<8xf32> to vector<8x1xf32>
    %89 = vector.broadcast %88 : vector<8x1xf32> to vector<8x8xf32>
    %90 = arith.divf %86, %89 : vector<8x8xf32>
    %91 = arith.addf %69, %90 : vector<8x8xf32>
    %cst_51 = arith.constant dense<0.000000e+00> : vector<8x8xf32>
    %92 = tpu.matmul %90, %76, %cst_51 {dimension_numbers = #tpu.dot_dimension_numbers<[1], [0], [0], [1], [0, 0, 1, 1], [], []>} : vector<8x8xf32>, vector<8x8xf32>, vector<8x8xf32> -> vector<8x8xf32>
    %c16 = arith.constant 16 : index
    %c0_52 = arith.constant 0 : index
    %93 = vector.load %arg11[%c16, %c0_52] : memref<32x32xf32, #tpu.memory_space<vmem>>, vector<8x32xf32>
    %cst_53 = arith.constant dense<0.000000e+00> : vector<8x32xf32>
    %94 = tpu.matmul %92, %93, %cst_53 {dimension_numbers = #tpu.dot_dimension_numbers<[1], [0], [0], [1], [0, 0, 1, 1], [], []>} : vector<8x8xf32>, vector<8x32xf32>, vector<8x32xf32> -> vector<8x32xf32>
    %95 = arith.addf %73, %94 : vector<8x32xf32>
    %96 = vector.extract_strided_slice %10 {offsets = [0, 24], sizes = [8, 8], strides = [1, 1]} : vector<8x32xf32> to vector<8x8xf32>
    %97 = vector.extract_strided_slice %15 {offsets = [0, 24], sizes = [8, 8], strides = [1, 1]} : vector<8x32xf32> to vector<8x8xf32>
    %98 = vector.extract_strided_slice %20 {offsets = [0, 24], sizes = [8, 8], strides = [1, 1]} : vector<8x32xf32> to vector<8x8xf32>
    %cst_54 = arith.constant dense<0.000000e+00> : vector<8x8xf32>
    %99 = tpu.matmul %96, %97, %cst_54 {dimension_numbers = #tpu.dot_dimension_numbers<[1], [1], [0], [0], [0, 0, 1, 0], [], []>} : vector<8x8xf32>, vector<8x8xf32>, vector<8x8xf32> -> vector<8x8xf32>
    %cst_55 = arith.constant 0.353553385 : f32
    %100 = vector.broadcast %cst_55 : f32 to vector<8x8xf32>
    %101 = arith.mulf %99, %100 : vector<8x8xf32>
    %cst_56 = arith.constant -1.000000e+09 : f32
    %102 = vector.broadcast %cst_56 : f32 to vector<8x8xf32>
    %103 = arith.select %29, %102, %101 : vector<8x8xi1>, vector<8x8xf32>
    %cst_57 = arith.constant dense<0xFF800000> : vector<8xf32>
    %104 = vector.multi_reduction <maximumf>, %103, %cst_57 [1] : vector<8x8xf32> to vector<8xf32>
    %105 = vector.shape_cast %104 : vector<8xf32> to vector<8x1xf32>
    %106 = vector.broadcast %105 : vector<8x1xf32> to vector<8x8xf32>
    %107 = arith.subf %103, %106 : vector<8x8xf32>
    %108 = math.exp %107 : vector<8x8xf32>
    %cst_58 = arith.constant dense<0.000000e+00> : vector<8xf32>
    %109 = vector.multi_reduction <add>, %108, %cst_58 [1] : vector<8x8xf32> to vector<8xf32>
    %110 = vector.shape_cast %109 : vector<8xf32> to vector<8x1xf32>
    %111 = vector.broadcast %110 : vector<8x1xf32> to vector<8x8xf32>
    %112 = arith.divf %108, %111 : vector<8x8xf32>
    %113 = arith.addf %91, %112 : vector<8x8xf32>
    %cst_59 = arith.constant dense<0.000000e+00> : vector<8x8xf32>
    %114 = tpu.matmul %112, %98, %cst_59 {dimension_numbers = #tpu.dot_dimension_numbers<[1], [0], [0], [1], [0, 0, 1, 1], [], []>} : vector<8x8xf32>, vector<8x8xf32>, vector<8x8xf32> -> vector<8x8xf32>
    %c24 = arith.constant 24 : index
    %c0_60 = arith.constant 0 : index
    %115 = vector.load %arg11[%c24, %c0_60] : memref<32x32xf32, #tpu.memory_space<vmem>>, vector<8x32xf32>
    %cst_61 = arith.constant dense<0.000000e+00> : vector<8x32xf32>
    %116 = tpu.matmul %114, %115, %cst_61 {dimension_numbers = #tpu.dot_dimension_numbers<[1], [0], [0], [1], [0, 0, 1, 1], [], []>} : vector<8x8xf32>, vector<8x32xf32>, vector<8x32xf32> -> vector<8x32xf32>
    %117 = arith.addf %95, %116 : vector<8x32xf32>
    %c0_62 = arith.constant 0 : index
    %c0_63 = arith.constant 0 : index
    %c0_64 = arith.constant 0 : index
    %118 = vector.load %arg13[%c0_62, %c0_63, %c0_64] : memref<1x8x32xf32, #tpu.memory_space<vmem>>, vector<1x8x32xf32>
    %119 = vector.shape_cast %118 : vector<1x8x32xf32> to vector<8x32xf32>
    %120 = vector.shape_cast %117 : vector<8x32xf32> to vector<1x8x32xf32>
    tpu.vector_store %arg13[%c0_62, %c0_63, %c0_64], %120 {strides = array<i32>} : memref<1x8x32xf32, #tpu.memory_space<vmem>>, vector<1x8x32xf32>,
    %cst_65 = arith.constant 2.500000e-01 : f32
    %121 = vector.broadcast %cst_65 : f32 to vector<8x8xf32>
    %122 = arith.mulf %113, %121 : vector<8x8xf32>
    %c0_66 = arith.constant 0 : index
    %c0_67 = arith.constant 0 : index
    %c0_68 = arith.constant 0 : index
    %123 = vector.load %arg14[%c0_66, %c0_67, %c0_68] : memref<1x8x8xf32, #tpu.memory_space<vmem>>, vector<1x8x8xf32>
    %124 = vector.shape_cast %123 : vector<1x8x8xf32> to vector<8x8xf32>
    %125 = vector.shape_cast %122 : vector<8x8xf32> to vector<1x8x8xf32>
    tpu.vector_store %arg14[%c0_66, %c0_67, %c0_68], %125 {strides = array<i32>} : memref<1x8x8xf32, #tpu.memory_space<vmem>>, vector<1x8x8xf32>,
    return
  }
  func.func @transform_0(%arg0: i32) -> (i32, i32, i32) {
    %c0_i32 = arith.constant 0 : i32
    %c0_i32_0 = arith.constant 0 : i32
    %c0_i32_1 = arith.constant 0 : i32
    return %arg0, %c0_i32, %c0_i32_0 : i32, i32, i32
  }
  func.func @transform_1(%arg0: i32) -> (i32, i32, i32) {
    %c0_i32 = arith.constant 0 : i32
    %c0_i32_0 = arith.constant 0 : i32
    %c0_i32_1 = arith.constant 0 : i32
    return %arg0, %c0_i32, %c0_i32_0 : i32, i32, i32
  }
  func.func @transform_2(%arg0: i32) -> (i32, i32, i32) {
    %c0_i32 = arith.constant 0 : i32
    %c0_i32_0 = arith.constant 0 : i32
    %c0_i32_1 = arith.constant 0 : i32
    return %arg0, %c0_i32, %c0_i32_0 : i32, i32, i32
  }
  func.func @transform_3(%arg0: i32) -> (i32, i32, i32) {
    %c0_i32 = arith.constant 0 : i32
    %c0_i32_0 = arith.constant 0 : i32
    %c0_i32_1 = arith.constant 0 : i32
    return %arg0, %c0_i32, %c0_i32_0 : i32, i32, i32
  }
  func.func @transform_4(%arg0: i32) -> (i32, i32) {
    %c0_i32 = arith.constant 0 : i32
    %c0_i32_0 = arith.constant 0 : i32
    %c0_i32_1 = arith.constant 0 : i32
    return %c0_i32, %c0_i32_0 : i32, i32
  }
  func.func @transform_5(%arg0: i32) -> (i32, i32) {
    %c0_i32 = arith.constant 0 : i32
    %c0_i32_0 = arith.constant 0 : i32
    %c0_i32_1 = arith.constant 0 : i32
    return %c0_i32, %c0_i32_0 : i32, i32
  }
  func.func @transform_6(%arg0: i32) -> (i32, i32) {
    %c0_i32 = arith.constant 0 : i32
    %c0_i32_0 = arith.constant 0 : i32
    %c0_i32_1 = arith.constant 0 : i32
    return %c0_i32, %c0_i32_0 : i32, i32
  }
  func.func @transform_7(%arg0: i32) -> (i32, i32) {
    %c0_i32 = arith.constant 0 : i32
    %c0_i32_0 = arith.constant 0 : i32
    %c0_i32_1 = arith.constant 0 : i32
    return %c0_i32, %c0_i32_0 : i32, i32
  }
  func.func @transform_8(%arg0: i32) -> (i32, i32) {
    %c0_i32 = arith.constant 0 : i32
    %c0_i32_0 = arith.constant 0 : i32
    %c0_i32_1 = arith.constant 0 : i32
    return %c0_i32, %c0_i32_0 : i32, i32
  }
  func.func @transform_9(%arg0: i32) -> (i32, i32) {
    %c0_i32 = arith.constant 0 : i32
    %c0_i32_0 = arith.constant 0 : i32
    %c0_i32_1 = arith.constant 0 : i32
    return %c0_i32, %c0_i32_0 : i32, i32
  }
  func.func @transform_10(%arg0: i32) -> (i32, i32) {
    %c0_i32 = arith.constant 0 : i32
    %c0_i32_0 = arith.constant 0 : i32
    %c0_i32_1 = arith.constant 0 : i32
    return %c0_i32, %c0_i32_0 : i32, i32
  }
  func.func @transform_11(%arg0: i32) -> (i32, i32) {
    %c0_i32 = arith.constant 0 : i32
    %c0_i32_0 = arith.constant 0 : i32
    %c0_i32_1 = arith.constant 0 : i32
    return %c0_i32, %c0_i32_0 : i32, i32
  }
  func.func @transform_12(%arg0: i32) -> (i32, i32, i32) {
    %c0_i32 = arith.constant 0 : i32
    %c0_i32_0 = arith.constant 0 : i32
    %c0_i32_1 = arith.constant 0 : i32
    return %arg0, %c0_i32, %c0_i32_0 : i32, i32, i32
  }
  func.func @transform_13(%arg0: i32) -> (i32, i32, i32) {
    %c0_i32 = arith.constant 0 : i32
    %c0_i32_0 = arith.constant 0 : i32
    %c0_i32_1 = arith.constant 0 : i32
    return %arg0, %c0_i32, %c0_i32_0 : i32, i32, i32
  }
}

</mosaic_0001>

<llo_original>
// kernel: multi_headed_attention.1
$region0: #{multi_headed_attention.1}
  #allocation0 [shape = 'u32[]', space=smem, size = 0x4, offset = 0x4, fixed_abs, tag = 'smem constant byte address 0x4 - core index']
  #allocation1 [shape = 'u32[144,128]{1,0:T(1,128)}', space=vmem, size = 0x12000, scoped, tag = 'internal scratch']
  %s0 = inlined_call_operand.hbm [shape: f32[2,8,32], index: 0, kind: input, shape index: {}]
  %s1 = inlined_call_operand.hbm [shape: f32[2,8,32], index: 1, kind: input, shape index: {}]
  %s2 = inlined_call_operand.hbm [shape: f32[2,8,32], index: 2, kind: input, shape index: {}]
  %s3 = inlined_call_operand.vmem [shape: s32[2,8,8], index: 3, kind: input, shape index: {}]
  %s4 = inlined_call_operand.hbm [shape: f32[32,32], index: 4, kind: input, shape index: {}]
  %s5 = inlined_call_operand.vmem [shape: f32[1,32], index: 5, kind: input, shape index: {}]
  %s6 = inlined_call_operand.vmem [shape: f32[32,32], index: 6, kind: input, shape index: {}]
  %s7 = inlined_call_operand.hbm [shape: f32[1,32], index: 7, kind: input, shape index: {}]
  %s8 = inlined_call_operand.hbm [shape: f32[32,32], index: 8, kind: input, shape index: {}]
  %s9 = inlined_call_operand.hbm [shape: f32[1,32], index: 9, kind: input, shape index: {}]
  %s10 = inlined_call_operand.hbm [shape: f32[32,32], index: 10, kind: input, shape index: {}]
  %s11 = inlined_call_operand.vmem [shape: f32[1,32], index: 11, kind: input, shape index: {}]
  %s12 = inlined_call_operand.hbm [shape: f32[2,8,32], index: 12, kind: output, shape index: {0}]
  %s13 = inlined_call_operand.hbm [shape: f32[2,8,8], index: 13, kind: output, shape index: {1}]
  %14 = xla_tuple %s12, %s13
  %s15 = sld [smem:[#allocation0]]
  $region121: #{multi_headed_attention.1} parent=0
    _
  %s17 = ssub.s32 1, %s15
  %s18 = scalar_select 0, %s17, %s15
  $region1: #{multi_headed_attention.1} parent=0
    #allocation2 [shape = 'u8[8192]{0}', space=vmem, size = 0x2000, scoped, tag = 'input window, operand 0']
    #allocation3 [shape = 's32[2]{0}', space=sflag, size = 0x8, scoped, tag = 'scoped memory for multi_headed_attention.1']
    #allocation4 [shape = 's32[2]{0}', space=sflag, size = 0x8, scoped, tag = 'scoped memory for multi_headed_attention.1']
    #allocation5 [shape = 'u8[8192]{0}', space=vmem, size = 0x2000, scoped, tag = 'input window, operand 1']
    #allocation6 [shape = 's32[2]{0}', space=sflag, size = 0x8, scoped, tag = 'scoped memory for multi_headed_attention.1']
    #allocation7 [shape = 'u8[8192]{0}', space=vmem, size = 0x2000, scoped, tag = 'input window, operand 2']
    #allocation8 [shape = 'u8[16384]{0}', space=vmem, size = 0x4000, scoped, tag = 'input window, operand 4, single buffered']
    #allocation9 [shape = 's32[1]{0}', space=sflag, size = 0x4, scoped, tag = 'scoped memory for multi_headed_attention.1']
    #allocation10 [shape = 'u8[512]{0}', space=vmem, size = 0x400, scoped, tag = 'input window, operand 7, single buffered']
    #allocation11 [shape = 'u8[16384]{0}', space=vmem, size = 0x4000, scoped, tag = 'input window, operand 8, single buffered']
    #allocation12 [shape = 's32[1]{0}', space=sflag, size = 0x4, scoped, tag = 'scoped memory for multi_headed_attention.1']
    #allocation13 [shape = 'u8[512]{0}', space=vmem, size = 0x400, scoped, tag = 'input window, operand 9, single buffered']
    #allocation14 [shape = 'u8[16384]{0}', space=vmem, size = 0x4000, scoped, tag = 'input window, operand 10, single buffered']
    #allocation15 [shape = 's32[1]{0}', space=sflag, size = 0x4, scoped, tag = 'scoped memory for multi_headed_attention.1']
    #allocation16 [shape = 'u8[8192]{0}', space=vmem, size = 0x2000, scoped, tag = 'output window, operand 0']
    #allocation17 [shape = 'u8[8192]{0}', space=vmem, size = 0x2000, scoped, tag = 'output window, operand 1']
    #allocation18 [shape = 's32[2]{0}', space=sflag, size = 0x8, scoped, tag = 'scoped memory for multi_headed_attention.1']
    %19 = vsyncpa [#allocation3], 0
    %s20 = scalar_lea.sflag [#allocation3], 1
    %21 = vsyncpa %s20, 0
    %22 = vsyncpa [#allocation6], 0
    %s23 = scalar_lea.sflag [#allocation6], 1
    %24 = vsyncpa %s23, 0
    %25 = vsyncpa [#allocation9], 0
    %26 = vsyncpa [#allocation12], 0
    %27 = vsyncpa [#allocation15], 0
    %28 = vsyncpa [#allocation4], 0
    %s29 = scalar_lea.sflag [#allocation4], 1
    %30 = vsyncpa %s29, 0
    %31 = vsyncpa [#allocation18], 0
    %s32 = scalar_lea.sflag [#allocation18], 1
    %33 = vsyncpa %s32, 0
    loop: start=0, step=1, limit=4
    $region2: #{multi_headed_attention.1} parent=1 // loop_pre_header
      _
    $region3: #{multi_headed_attention.1} parent=1 // loop_header
      %s35 = sphi 0, %s39
      %p36 = scmp.ge.s32.totalorder %s35, 4
      %s45 = sphi 0, %s47
      %s48 = sphi 0, %s45
      %s49 = sphi 0, %s48
      %s65 = sphi 0, %s49
      %s71 = sphi 0, %s73
      %s74 = sphi 0, %s71
      %s75 = sphi 0, %s74
      %s91 = sphi 0, %s75
      %s97 = sphi 0, %s99
      %s100 = sphi 0, %s97
      %s101 = sphi 0, %s100
      %s117 = sphi 0, %s101
      %s123 = sphi 0, %s125
      %s126 = sphi 0, %s123
      %s127 = sphi 0, %s126
      %s143 = sphi 0, %s127
      %s147 = sphi 0, %s147
      %s149 = sphi 0, %s147
      %s150 = sphi 0, %s149
      %s164 = sphi 0, %s150
      %s168 = sphi 0, %s168
      %s170 = sphi 0, %s168
      %s171 = sphi 0, %s170
      %s185 = sphi 0, %s171
      %s189 = sphi 0, %s189
      %s191 = sphi 0, %s189
      %s192 = sphi 0, %s191
      %s206 = sphi 0, %s192
      %s210 = sphi 0, %s210
      %s212 = sphi 0, %s210
      %s213 = sphi 0, %s212
      %s227 = sphi 0, %s213
      %s231 = sphi 0, %s231
      %s233 = sphi 0, %s231
      %s234 = sphi 0, %s233
      %s248 = sphi 0, %s234
      %s252 = sphi 0, %s252
      %s254 = sphi 0, %s252
      %s255 = sphi 0, %s254
      %s269 = sphi 0, %s255
      %s273 = sphi 0, %s273
      %s275 = sphi 0, %s273
      %s276 = sphi 0, %s275
      %s290 = sphi 0, %s276
      %s294 = sphi 0, %s294
      %s296 = sphi 0, %s294
      %s297 = sphi 0, %s296
      %s311 = sphi 0, %s297
      %s317 = sphi 0, %s319
      %s320 = sphi 0, %s317
      %s321 = sphi 0, %s320
      %s337 = sphi 0, %s321
      %s343 = sphi 0, %s345
      %s346 = sphi 0, %s343
      %s347 = sphi 0, %s346
      %s363 = sphi 0, %s347
    $region4: #{multi_headed_attention.1} parent=1 // loop_header_branch
      %38 = sbr.rel (%p36) target = $region8
    $region5: #{multi_headed_attention.1} parent=1 // loop_body
      %s40 = ssub.s32 %s35, 1
      %s41 = ssub.s32 %s35, 2
      %s42 = sadd.s32 %s35, 1
      %s43 = ssub.s32 %s35, %s42
      %p44 = scmp.eq.s32.totalorder %s43, 0
      %s46 = sadd.s32 %s45, 1
      %s47 = scalar_select %p44, %s45, %s46
      %p50 = pneg %p44
      %p51 = scmp.eq.s32.totalorder %s35, 1
      %p52 = por %p50, %p51
      %p53 = scmp.ne.s32.totalorder %s45, %s48
      %p54 = scmp.eq.s32.totalorder %s35, 0
      %p55 = por %p53, %p54
      %p56 = scmp.ne.s32.totalorder %s45, %s48
      %p57 = scmp.eq.s32.totalorder %s40, 1
      %p58 = por %p56, %p57
      %p59 = scmp.ne.s32.totalorder %s48, %s49
      %p60 = scmp.eq.s32.totalorder %s40, 0
      %p61 = por %p59, %p60
      %p62 = scmp.ne.s32.totalorder %s48, %s49
      %p63 = scmp.eq.s32.totalorder %s41, 1
      %p64 = por %p62, %p63
      %p66 = scmp.ne.s32.totalorder %s49, %s65
      %p67 = scmp.eq.s32.totalorder %s41, 0
      %p68 = por %p66, %p67
      %s69 = ssub.s32 %s35, %s42
      %p70 = scmp.eq.s32.totalorder %s69, 0
      %s72 = sadd.s32 %s71, 1
      %s73 = scalar_select %p70, %s71, %s72
      %p76 = pneg %p70
      %p77 = scmp.eq.s32.totalorder %s35, 1
      %p78 = por %p76, %p77
      %p79 = scmp.ne.s32.totalorder %s71, %s74
      %p80 = scmp.eq.s32.totalorder %s35, 0
      %p81 = por %p79, %p80
      %p82 = scmp.ne.s32.totalorder %s71, %s74
      %p83 = scmp.eq.s32.totalorder %s40, 1
      %p84 = por %p82, %p83
      %p85 = scmp.ne.s32.totalorder %s74, %s75
      %p86 = scmp.eq.s32.totalorder %s40, 0
      %p87 = por %p85, %p86
      %p88 = scmp.ne.s32.totalorder %s74, %s75
      %p89 = scmp.eq.s32.totalorder %s41, 1
      %p90 = por %p88, %p89
      %p92 = scmp.ne.s32.totalorder %s75, %s91
      %p93 = scmp.eq.s32.totalorder %s41, 0
      %p94 = por %p92, %p93
      %s95 = ssub.s32 %s35, %s42
      %p96 = scmp.eq.s32.totalorder %s95, 0
      %s98 = sadd.s32 %s97, 1
      %s99 = scalar_select %p96, %s97, %s98
      %p102 = pneg %p96
      %p103 = scmp.eq.s32.totalorder %s35, 1
      %p104 = por %p102, %p103
      %p105 = scmp.ne.s32.totalorder %s97, %s100
      %p106 = scmp.eq.s32.totalorder %s35, 0
      %p107 = por %p105, %p106
      %p108 = scmp.ne.s32.totalorder %s97, %s100
      %p109 = scmp.eq.s32.totalorder %s40, 1
      %p110 = por %p108, %p109
      %p111 = scmp.ne.s32.totalorder %s100, %s101
      %p112 = scmp.eq.s32.totalorder %s40, 0
      %p113 = por %p111, %p112
      %p114 = scmp.ne.s32.totalorder %s100, %s101
      %p115 = scmp.eq.s32.totalorder %s41, 1
      %p116 = por %p114, %p115
      %p118 = scmp.ne.s32.totalorder %s101, %s117
      %p119 = scmp.eq.s32.totalorder %s41, 0
      %p120 = por %p118, %p119
      %s121 = ssub.s32 %s35, %s42
      %p122 = scmp.eq.s32.totalorder %s121, 0
      %s124 = sadd.s32 %s123, 1
      %s125 = scalar_select %p122, %s123, %s124
      %p128 = pneg %p122
      %p129 = scmp.eq.s32.totalorder %s35, 1
      %p130 = por %p128, %p129
      %p131 = scmp.ne.s32.totalorder %s123, %s126
      %p132 = scmp.eq.s32.totalorder %s35, 0
      %p133 = por %p131, %p132
      %p134 = scmp.ne.s32.totalorder %s123, %s126
      %p135 = scmp.eq.s32.totalorder %s40, 1
      %p136 = por %p134, %p135
      %p137 = scmp.ne.s32.totalorder %s126, %s127
      %p138 = scmp.eq.s32.totalorder %s40, 0
      %p139 = por %p137, %p138
      %p140 = scmp.ne.s32.totalorder %s126, %s127
      %p141 = scmp.eq.s32.totalorder %s41, 1
      %p142 = por %p140, %p141
      %p144 = scmp.ne.s32.totalorder %s127, %s143
      %p145 = scmp.eq.s32.totalorder %s41, 0
      %p146 = por %p144, %p145
      %s148 = sadd.s32 %s147, 1
      %p151 = scmp.eq.s32.totalorder %s35, 1
      %p152 = scmp.ne.s32.totalorder %s147, %s149
      %p153 = scmp.eq.s32.totalorder %s35, 0
      %p154 = por %p152, %p153
      %p155 = scmp.ne.s32.totalorder %s147, %s149
      %p156 = scmp.eq.s32.totalorder %s40, 1
      %p157 = por %p155, %p156
      %p158 = scmp.ne.s32.totalorder %s149, %s150
      %p159 = scmp.eq.s32.totalorder %s40, 0
      %p160 = por %p158, %p159
      %p161 = scmp.ne.s32.totalorder %s149, %s150
      %p162 = scmp.eq.s32.totalorder %s41, 1
      %p163 = por %p161, %p162
      %p165 = scmp.ne.s32.totalorder %s150, %s164
      %p166 = scmp.eq.s32.totalorder %s41, 0
      %p167 = por %p165, %p166
      %s169 = sadd.s32 %s168, 1
      %p172 = scmp.eq.s32.totalorder %s35, 1
      %p173 = scmp.ne.s32.totalorder %s168, %s170
      %p174 = scmp.eq.s32.totalorder %s35, 0
      %p175 = por %p173, %p174
      %p176 = scmp.ne.s32.totalorder %s168, %s170
      %p177 = scmp.eq.s32.totalorder %s40, 1
      %p178 = por %p176, %p177
      %p179 = scmp.ne.s32.totalorder %s170, %s171
      %p180 = scmp.eq.s32.totalorder %s40, 0
      %p181 = por %p179, %p180
      %p182 = scmp.ne.s32.totalorder %s170, %s171
      %p183 = scmp.eq.s32.totalorder %s41, 1
      %p184 = por %p182, %p183
      %p186 = scmp.ne.s32.totalorder %s171, %s185
      %p187 = scmp.eq.s32.totalorder %s41, 0
      %p188 = por %p186, %p187
      %s190 = sadd.s32 %s189, 1
      %p193 = scmp.eq.s32.totalorder %s35, 1
      %p194 = scmp.ne.s32.totalorder %s189, %s191
      %p195 = scmp.eq.s32.totalorder %s35, 0
      %p196 = por %p194, %p195
      %p197 = scmp.ne.s32.totalorder %s189, %s191
      %p198 = scmp.eq.s32.totalorder %s40, 1
      %p199 = por %p197, %p198
      %p200 = scmp.ne.s32.totalorder %s191, %s192
      %p201 = scmp.eq.s32.totalorder %s40, 0
      %p202 = por %p200, %p201
      %p203 = scmp.ne.s32.totalorder %s191, %s192
      %p204 = scmp.eq.s32.totalorder %s41, 1
      %p205 = por %p203, %p204
      %p207 = scmp.ne.s32.totalorder %s192, %s206
      %p208 = scmp.eq.s32.totalorder %s41, 0
      %p209 = por %p207, %p208
      %s211 = sadd.s32 %s210, 1
      %p214 = scmp.eq.s32.totalorder %s35, 1
      %p215 = scmp.ne.s32.totalorder %s210, %s212
      %p216 = scmp.eq.s32.totalorder %s35, 0
      %p217 = por %p215, %p216
      %p218 = scmp.ne.s32.totalorder %s210, %s212
      %p219 = scmp.eq.s32.totalorder %s40, 1
      %p220 = por %p218, %p219
      %p221 = scmp.ne.s32.totalorder %s212, %s213
      %p222 = scmp.eq.s32.totalorder %s40, 0
      %p223 = por %p221, %p222
      %p224 = scmp.ne.s32.totalorder %s212, %s213
      %p225 = scmp.eq.s32.totalorder %s41, 1
      %p226 = por %p224, %p225
      %p228 = scmp.ne.s32.totalorder %s213, %s227
      %p229 = scmp.eq.s32.totalorder %s41, 0
      %p230 = por %p228, %p229
      %s232 = sadd.s32 %s231, 1
      %p235 = scmp.eq.s32.totalorder %s35, 1
      %p236 = scmp.ne.s32.totalorder %s231, %s233
      %p237 = scmp.eq.s32.totalorder %s35, 0
      %p238 = por %p236, %p237
      %p239 = scmp.ne.s32.totalorder %s231, %s233
      %p240 = scmp.eq.s32.totalorder %s40, 1
      %p241 = por %p239, %p240
      %p242 = scmp.ne.s32.totalorder %s233, %s234
      %p243 = scmp.eq.s32.totalorder %s40, 0
      %p244 = por %p242, %p243
      %p245 = scmp.ne.s32.totalorder %s233, %s234
      %p246 = scmp.eq.s32.totalorder %s41, 1
      %p247 = por %p245, %p246
      %p249 = scmp.ne.s32.totalorder %s234, %s248
      %p250 = scmp.eq.s32.totalorder %s41, 0
      %p251 = por %p249, %p250
      %s253 = sadd.s32 %s252, 1
      %p256 = scmp.eq.s32.totalorder %s35, 1
      %p257 = scmp.ne.s32.totalorder %s252, %s254
      %p258 = scmp.eq.s32.totalorder %s35, 0
      %p259 = por %p257, %p258
      %p260 = scmp.ne.s32.totalorder %s252, %s254
      %p261 = scmp.eq.s32.totalorder %s40, 1
      %p262 = por %p260, %p261
      %p263 = scmp.ne.s32.totalorder %s254, %s255
      %p264 = scmp.eq.s32.totalorder %s40, 0
      %p265 = por %p263, %p264
      %p266 = scmp.ne.s32.totalorder %s254, %s255
      %p267 = scmp.eq.s32.totalorder %s41, 1
      %p268 = por %p266, %p267
      %p270 = scmp.ne.s32.totalorder %s255, %s269
      %p271 = scmp.eq.s32.totalorder %s41, 0
      %p272 = por %p270, %p271
      %s274 = sadd.s32 %s273, 1
      %p277 = scmp.eq.s32.totalorder %s35, 1
      %p278 = scmp.ne.s32.totalorder %s273, %s275
      %p279 = scmp.eq.s32.totalorder %s35, 0
      %p280 = por %p278, %p279
      %p281 = scmp.ne.s32.totalorder %s273, %s275
      %p282 = scmp.eq.s32.totalorder %s40, 1
      %p283 = por %p281, %p282
      %p284 = scmp.ne.s32.totalorder %s275, %s276
      %p285 = scmp.eq.s32.totalorder %s40, 0
      %p286 = por %p284, %p285
      %p287 = scmp.ne.s32.totalorder %s275, %s276
      %p288 = scmp.eq.s32.totalorder %s41, 1
      %p289 = por %p287, %p288
      %p291 = scmp.ne.s32.totalorder %s276, %s290
      %p292 = scmp.eq.s32.totalorder %s41, 0
      %p293 = por %p291, %p292
      %s295 = sadd.s32 %s294, 1
      %p298 = scmp.eq.s32.totalorder %s35, 1
      %p299 = scmp.ne.s32.totalorder %s294, %s296
      %p300 = scmp.eq.s32.totalorder %s35, 0
      %p301 = por %p299, %p300
      %p302 = scmp.ne.s32.totalorder %s294, %s296
      %p303 = scmp.eq.s32.totalorder %s40, 1
      %p304 = por %p302, %p303
      %p305 = scmp.ne.s32.totalorder %s296, %s297
      %p306 = scmp.eq.s32.totalorder %s40, 0
      %p307 = por %p305, %p306
      %p308 = scmp.ne.s32.totalorder %s296, %s297
      %p309 = scmp.eq.s32.totalorder %s41, 1
      %p310 = por %p308, %p309
      %p312 = scmp.ne.s32.totalorder %s297, %s311
      %p313 = scmp.eq.s32.totalorder %s41, 0
      %p314 = por %p312, %p313
      %s315 = ssub.s32 %s35, %s42
      %p316 = scmp.eq.s32.totalorder %s315, 0
      %s318 = sadd.s32 %s317, 1
      %s319 = scalar_select %p316, %s317, %s318
      %p322 = pneg %p316
      %p323 = scmp.eq.s32.totalorder %s35, 1
      %p324 = por %p322, %p323
      %p325 = scmp.ne.s32.totalorder %s317, %s320
      %p326 = scmp.eq.s32.totalorder %s35, 0
      %p327 = por %p325, %p326
      %p328 = scmp.ne.s32.totalorder %s317, %s320
      %p329 = scmp.eq.s32.totalorder %s40, 1
      %p330 = por %p328, %p329
      %p331 = scmp.ne.s32.totalorder %s320, %s321
      %p332 = scmp.eq.s32.totalorder %s40, 0
      %p333 = por %p331, %p332
      %p334 = scmp.ne.s32.totalorder %s320, %s321
      %p335 = scmp.eq.s32.totalorder %s41, 1
      %p336 = por %p334, %p335
      %p338 = scmp.ne.s32.totalorder %s321, %s337
      %p339 = scmp.eq.s32.totalorder %s41, 0
      %p340 = por %p338, %p339
      %s341 = ssub.s32 %s35, %s42
      %p342 = scmp.eq.s32.totalorder %s341, 0
      %s344 = sadd.s32 %s343, 1
      %s345 = scalar_select %p342, %s343, %s344
      %p348 = pneg %p342
      %p349 = scmp.eq.s32.totalorder %s35, 1
      %p350 = por %p348, %p349
      %p351 = scmp.ne.s32.totalorder %s343, %s346
      %p352 = scmp.eq.s32.totalorder %s35, 0
      %p353 = por %p351, %p352
      %p354 = scmp.ne.s32.totalorder %s343, %s346
      %p355 = scmp.eq.s32.totalorder %s40, 1
      %p356 = por %p354, %p355
      %p357 = scmp.ne.s32.totalorder %s346, %s347
      %p358 = scmp.eq.s32.totalorder %s40, 0
      %p359 = por %p357, %p358
      %p360 = scmp.ne.s32.totalorder %s346, %s347
      %p361 = scmp.eq.s32.totalorder %s41, 1
      %p362 = por %p360, %p361
      %p364 = scmp.ne.s32.totalorder %s347, %s363
      %p365 = scmp.eq.s32.totalorder %s41, 0
      %p366 = por %p364, %p365
      %p367 = scmp.le.s32.totalorder 1, %s35
      %p368 = scmp.lt.s32.totalorder %s35, 3
      %p369 = pnand %p367, %p368
      %p370 = pneg %p369
      // Predicated region
      $region9: #{multi_headed_attention.1} parent=5 // pred_check
        _
      $region10: #{multi_headed_attention.1} parent=5 // pred_check_branch
        %372 = sbr.rel (%p369) target = $region12
      $region11: #{multi_headed_attention.1} parent=5 // pred_region
        %s373 = ssub.s32 %s35, 1
        // Predicated region
        $region13: #{multi_headed_attention.1} parent=11 // pred_check
          %p374 = pneg %p160
        $region14: #{multi_headed_attention.1} parent=11 // pred_check_branch
          %376 = sbr.rel (%p374) target = $region16
        $region15: #{multi_headed_attention.1} parent=11 // pred_region
          %s378 = ssub.s32 512, 512
          %379 = vsyncadd [#allocation9], %s378
          %s380 = sshll.u32 [#allocation8], 4
          %s381 = int_to_ptr.vmem [resolvable:$true] %s380
          %386 = dma.hbm_to_vmem [thread:$0]  %s4, 512, %s381, [#allocation9], 128, 128, 8
        $region16: #{multi_headed_attention.1} parent=11 // pred_fallthru
          _
        // Predicated region
        $region17: #{multi_headed_attention.1} parent=11 // pred_check
          %p387 = pneg %p181
        $region18: #{multi_headed_attention.1} parent=11 // pred_check_branch
          %389 = sbr.rel (%p387) target = $region20
        $region19: #{multi_headed_attention.1} parent=11 // pred_region
          _
        $region20: #{multi_headed_attention.1} parent=11 // pred_fallthru
          _
        // Predicated region
        $region21: #{multi_headed_attention.1} parent=11 // pred_check
          %p390 = pneg %p202
        $region22: #{multi_headed_attention.1} parent=11 // pred_check_branch
          %392 = sbr.rel (%p390) target = $region24
        $region23: #{multi_headed_attention.1} parent=11 // pred_region
          _
        $region24: #{multi_headed_attention.1} parent=11 // pred_fallthru
          _
        // Predicated region
        $region25: #{multi_headed_attention.1} parent=11 // pred_check
          %p393 = pneg %p223
        $region26: #{multi_headed_attention.1} parent=11 // pred_check_branch
          %395 = sbr.rel (%p393) target = $region28
        $region27: #{multi_headed_attention.1} parent=11 // pred_region
          %s397 = ssub.s32 16, 16
          %398 = vsyncadd [#allocation9], %s397
          %s400 = sshll.u32 [#allocation10], 4
          %s401 = int_to_ptr.vmem [resolvable:$true] %s400
          %403 = dma.hbm_to_vmem [thread:$0]  %s7, 16, %s401, [#allocation9]
        $region28: #{multi_headed_attention.1} parent=11 // pred_fallthru
          _
        // Predicated region
        $region29: #{multi_headed_attention.1} parent=11 // pred_check
          %p404 = pneg %p244
        $region30: #{multi_headed_attention.1} parent=11 // pred_check_branch
          %406 = sbr.rel (%p404) target = $region32
        $region31: #{multi_headed_attention.1} parent=11 // pred_region
          %s408 = ssub.s32 512, 512
          %409 = vsyncadd [#allocation12], %s408
          %s410 = sshll.u32 [#allocation11], 4
          %s411 = int_to_ptr.vmem [resolvable:$true] %s410
          %416 = dma.hbm_to_vmem [thread:$0]  %s8, 512, %s411, [#allocation12], 128, 128, 8
        $region32: #{multi_headed_attention.1} parent=11 // pred_fallthru
          _
        // Predicated region
        $region33: #{multi_headed_attention.1} parent=11 // pred_check
          %p417 = pneg %p265
        $region34: #{multi_headed_attention.1} parent=11 // pred_check_branch
          %419 = sbr.rel (%p417) target = $region36
        $region35: #{multi_headed_attention.1} parent=11 // pred_region
          %s421 = ssub.s32 16, 16
          %422 = vsyncadd [#allocation12], %s421
          %s424 = sshll.u32 [#allocation13], 4
          %s425 = int_to_ptr.vmem [resolvable:$true] %s424
          %427 = dma.hbm_to_vmem [thread:$0]  %s9, 16, %s425, [#allocation12]
        $region36: #{multi_headed_attention.1} parent=11 // pred_fallthru
          _
        // Predicated region
        $region37: #{multi_headed_attention.1} parent=11 // pred_check
          %p428 = pneg %p286
        $region38: #{multi_headed_attention.1} parent=11 // pred_check_branch
          %430 = sbr.rel (%p428) target = $region40
        $region39: #{multi_headed_attention.1} parent=11 // pred_region
          %s432 = ssub.s32 512, 512
          %433 = vsyncadd [#allocation15], %s432
          %s434 = sshll.u32 [#allocation14], 4
          %s435 = int_to_ptr.vmem [resolvable:$true] %s434
          %440 = dma.hbm_to_vmem [thread:$0]  %s10, 512, %s435, [#allocation15], 128, 128, 8
        $region40: #{multi_headed_attention.1} parent=11 // pred_fallthru
          _
        // Predicated region
        $region41: #{multi_headed_attention.1} parent=11 // pred_check
          %p441 = pneg %p307
        $region42: #{multi_headed_attention.1} parent=11 // pred_check_branch
          %443 = sbr.rel (%p441) target = $region44
        $region43: #{multi_headed_attention.1} parent=11 // pred_region
          _
        $region44: #{multi_headed_attention.1} parent=11 // pred_fallthru
          _
      $region12: #{multi_headed_attention.1} parent=5 // pred_fallthru
        _
      %p444 = scmp.lt.s32.totalorder %s35, 2
      // Predicated region
      $region45: #{multi_headed_attention.1} parent=5 // pred_check
        %p445 = pneg %p444
      $region46: #{multi_headed_attention.1} parent=5 // pred_check_branch
        %447 = sbr.rel (%p445) target = $region48
      $region47: #{multi_headed_attention.1} parent=5 // pred_region
        // Predicated region
        $region49: #{multi_headed_attention.1} parent=47 // pred_check
          %p448 = pneg %p55
        $region50: #{multi_headed_attention.1} parent=47 // pred_check_branch
          %450 = sbr.rel (%p448) target = $region52
        $region51: #{multi_headed_attention.1} parent=47 // pred_region
          %s451 = sand.u32 %s45, 1
          %s452 = scalar_lea.sflag [#allocation3], %s451
          %s453 = sand.u32 %s45, 1
          %s454 = smul.addr %s453, 8
          %s455 = scalar_lea.vmem [#allocation2], %s454
          %s457 = ssub.s32 128, 128
          %458 = vsyncadd %s452, %s457
          %s459 = smul.addr %s35, 128
          %s460 = scalar_lea.hbm %s0, %s459
          %s462 = sshll.u32 %s455, 4
          %s463 = int_to_ptr.vmem [resolvable:$true] %s462
          %465 = dma.hbm_to_vmem [thread:$0]  %s460, 128, %s463, %s452
        $region52: #{multi_headed_attention.1} parent=47 // pred_fallthru
          _
        // Predicated region
        $region53: #{multi_headed_attention.1} parent=47 // pred_check
          %p466 = pneg %p81
        $region54: #{multi_headed_attention.1} parent=47 // pred_check_branch
          %468 = sbr.rel (%p466) target = $region56
        $region55: #{multi_headed_attention.1} parent=47 // pred_region
          %s469 = sand.u32 %s35, 1
          %s470 = scalar_lea.sflag [#allocation6], %s469
          %s471 = sand.u32 %s71, 1
          %s472 = smul.addr %s471, 8
          %s473 = scalar_lea.vmem [#allocation5], %s472
          %s475 = ssub.s32 128, 128
          %476 = vsyncadd %s470, %s475
          %s477 = smul.addr %s35, 128
          %s478 = scalar_lea.hbm %s1, %s477
          %s480 = sshll.u32 %s473, 4
          %s481 = int_to_ptr.vmem [resolvable:$true] %s480
          %483 = dma.hbm_to_vmem [thread:$0]  %s478, 128, %s481, %s470
        $region56: #{multi_headed_attention.1} parent=47 // pred_fallthru
          _
        // Predicated region
        $region57: #{multi_headed_attention.1} parent=47 // pred_check
          %p484 = pneg %p107
        $region58: #{multi_headed_attention.1} parent=47 // pred_check_branch
          %486 = sbr.rel (%p484) target = $region60
        $region59: #{multi_headed_attention.1} parent=47 // pred_region
          %s487 = sand.u32 %s35, 1
          %s488 = scalar_lea.sflag [#allocation6], %s487
          %s489 = sand.u32 %s97, 1
          %s490 = smul.addr %s489, 8
          %s491 = scalar_lea.vmem [#allocation7], %s490
          %s493 = ssub.s32 128, 128
          %494 = vsyncadd %s488, %s493
          %s495 = smul.addr %s35, 128
          %s496 = scalar_lea.hbm %s2, %s495
          %s498 = sshll.u32 %s491, 4
          %s499 = int_to_ptr.vmem [resolvable:$true] %s498
          %501 = dma.hbm_to_vmem [thread:$0]  %s496, 128, %s499, %s488
        $region60: #{multi_headed_attention.1} parent=47 // pred_fallthru
          _
        // Predicated region
        $region61: #{multi_headed_attention.1} parent=47 // pred_check
          %p502 = pneg %p133
        $region62: #{multi_headed_attention.1} parent=47 // pred_check_branch
          %504 = sbr.rel (%p502) target = $region64
        $region63: #{multi_headed_attention.1} parent=47 // pred_region
          %p505 = scmp.lt.s32.totalorder %s35, 1
          %s506 = scalar_select %p505, %s35, 1
          %s507 = smul.addr %s506, 8
          %s508 = scalar_lea.vmem %s3, %s507
        $region64: #{multi_headed_attention.1} parent=47 // pred_fallthru
          _
      $region48: #{multi_headed_attention.1} parent=5 // pred_fallthru
        _
      %p509 = scmp.le.s32.totalorder 1, %s35
      %p510 = scmp.lt.s32.totalorder %s35, 3
      %p511 = pnand %p509, %p510
      %p512 = pneg %p511
      // Predicated region
      $region65: #{multi_headed_attention.1} parent=5 // pred_check
        _
      $region66: #{multi_headed_attention.1} parent=5 // pred_check_branch
        %514 = sbr.rel (%p511) target = $region68
      $region67: #{multi_headed_attention.1} parent=5 // pred_region
        %s515 = ssub.s32 %s35, 1
        %s516 = sand.u32 %s48, 1
        %s517 = scalar_lea.sflag [#allocation3], %s516
        %s518 = sand.u32 %s48, 1
        %s519 = smul.addr %s518, 8
        %s520 = scalar_lea.vmem [#allocation2], %s519
        // Predicated region
        $region69: #{multi_headed_attention.1} parent=67 // pred_check
          %p521 = pneg %p61
        $region70: #{multi_headed_attention.1} parent=67 // pred_check_branch
          %523 = sbr.rel (%p521) target = $region72
        $region71: #{multi_headed_attention.1} parent=67 // pred_region
          %524 = dma.done %s517, 128
        $region72: #{multi_headed_attention.1} parent=67 // pred_fallthru
          _
        %s525 = sand.u32 %s40, 1
        %s526 = scalar_lea.sflag [#allocation6], %s525
        %s527 = sand.u32 %s74, 1
        %s528 = smul.addr %s527, 8
        %s529 = scalar_lea.vmem [#allocation5], %s528
        // Predicated region
        $region73: #{multi_headed_attention.1} parent=67 // pred_check
          %p530 = pneg %p87
        $region74: #{multi_headed_attention.1} parent=67 // pred_check_branch
          %532 = sbr.rel (%p530) target = $region76
        $region75: #{multi_headed_attention.1} parent=67 // pred_region
          %533 = dma.done %s526, 128
        $region76: #{multi_headed_attention.1} parent=67 // pred_fallthru
          _
        %s534 = sand.u32 %s40, 1
        %s535 = scalar_lea.sflag [#allocation6], %s534
        %s536 = sand.u32 %s100, 1
        %s537 = smul.addr %s536, 8
        %s538 = scalar_lea.vmem [#allocation7], %s537
        // Predicated region
        $region77: #{multi_headed_attention.1} parent=67 // pred_check
          %p539 = pneg %p113
        $region78: #{multi_headed_attention.1} parent=67 // pred_check_branch
          %541 = sbr.rel (%p539) target = $region80
        $region79: #{multi_headed_attention.1} parent=67 // pred_region
          %542 = dma.done %s535, 128
        $region80: #{multi_headed_attention.1} parent=67 // pred_fallthru
          _
        // Predicated region
        $region81: #{multi_headed_attention.1} parent=67 // pred_check
          %p543 = pneg %p160
        $region82: #{multi_headed_attention.1} parent=67 // pred_check_branch
          %545 = sbr.rel (%p543) target = $region84
        $region83: #{multi_headed_attention.1} parent=67 // pred_region
          %546 = dma.done [#allocation9], 512
        $region84: #{multi_headed_attention.1} parent=67 // pred_fallthru
          _
        // Predicated region
        $region85: #{multi_headed_attention.1} parent=67 // pred_check
          %p547 = pneg %p223
        $region86: #{multi_headed_attention.1} parent=67 // pred_check_branch
          %549 = sbr.rel (%p547) target = $region88
        $region87: #{multi_headed_attention.1} parent=67 // pred_region
          %550 = dma.done [#allocation9], 16
        $region88: #{multi_headed_attention.1} parent=67 // pred_fallthru
          _
        // Predicated region
        $region89: #{multi_headed_attention.1} parent=67 // pred_check
          %p551 = pneg %p244
        $region90: #{multi_headed_attention.1} parent=67 // pred_check_branch
          %553 = sbr.rel (%p551) target = $region92
        $region91: #{multi_headed_attention.1} parent=67 // pred_region
          %554 = dma.done [#allocation12], 512
        $region92: #{multi_headed_attention.1} parent=67 // pred_fallthru
          _
        // Predicated region
        $region93: #{multi_headed_attention.1} parent=67 // pred_check
          %p555 = pneg %p265
        $region94: #{multi_headed_attention.1} parent=67 // pred_check_branch
          %557 = sbr.rel (%p555) target = $region96
        $region95: #{multi_headed_attention.1} parent=67 // pred_region
          %558 = dma.done [#allocation12], 16
        $region96: #{multi_headed_attention.1} parent=67 // pred_fallthru
          _
        // Predicated region
        $region97: #{multi_headed_attention.1} parent=67 // pred_check
          %p559 = pneg %p286
        $region98: #{multi_headed_attention.1} parent=67 // pred_check_branch
          %561 = sbr.rel (%p559) target = $region100
        $region99: #{multi_headed_attention.1} parent=67 // pred_region
          %562 = dma.done [#allocation15], 512
        $region100: #{multi_headed_attention.1} parent=67 // pred_fallthru
          _
        %s563 = sand.u32 %s48, 1
        %s564 = scalar_lea.sflag [#allocation3], %s563
        %s565 = sand.u32 %s48, 1
        %s566 = smul.addr %s565, 8
        %s567 = scalar_lea.vmem [#allocation2], %s566
        %p568 = pneg %p61
        %p569 = pneg %p58
        %s570 = sand.u32 %s40, 1
        %s571 = scalar_lea.sflag [#allocation6], %s570
        %s572 = sand.u32 %s74, 1
        %s573 = smul.addr %s572, 8
        %s574 = scalar_lea.vmem [#allocation5], %s573
        %p575 = pneg %p87
        %p576 = pneg %p84
        %s577 = sand.u32 %s40, 1
        %s578 = scalar_lea.sflag [#allocation6], %s577
        %s579 = sand.u32 %s100, 1
        %s580 = smul.addr %s579, 8
        %s581 = scalar_lea.vmem [#allocation7], %s580
        %p582 = pneg %p113
        %p583 = pneg %p110
        %p584 = scmp.lt.s32.totalorder %s40, 1
        %s585 = scalar_select %p584, %s40, 1
        %s586 = smul.addr %s585, 8
        %s587 = scalar_lea.vmem %s3, %s586
        %p588 = pneg %p139
        %p589 = pneg %p136
        %p590 = pneg %p160
        %p591 = pneg %p157
        %p592 = pneg %p181
        %p593 = pneg %p178
        %p594 = pneg %p202
        %p595 = pneg %p199
        %p596 = pneg %p223
        %p597 = pneg %p220
        %p598 = pneg %p244
        %p599 = pneg %p241
        %p600 = pneg %p265
        %p601 = pneg %p262
        %p602 = pneg %p286
        %p603 = pneg %p283
        %p604 = pneg %p307
        %p605 = pneg %p304
        %p606 = pneg %p333
        %p607 = pneg %p330
        %s608 = sand.u32 %s320, 1
        %s609 = scalar_lea.sflag [#allocation4], %s608
        %s610 = sand.u32 %s320, 1
        %s611 = smul.addr %s610, 8
        %s612 = scalar_lea.vmem [#allocation16], %s611
        %p613 = pneg %p359
        %p614 = pneg %p356
        %s615 = sand.u32 %s346, 1
        %s616 = scalar_lea.sflag [#allocation18], %s615
        %s617 = sand.u32 %s346, 1
        %s618 = smul.addr %s617, 8
        %s619 = scalar_lea.vmem [#allocation17], %s618
        %p620 = scmp.lt.s32.totalorder %s40, 1
        %s621 = scalar_select %p620, %s40, 1
        %s622 = smul.addr %s621, 8
        %s623 = scalar_lea.vmem %s3, %s622
        %v624 = vld [vmem:[%s520] sm:$0xff]
        %v625 = vld [vmem:[%s529] sm:$0xff]
        %v626 = vld [vmem:[%s538] sm:$0xff]
        %v627 = vld [vmem:[#allocation8] sm:$0xff]
        %v628 = vld [vmem:[#allocation8 + $0x8] sm:$0xff]
        %v629 = vld [vmem:[#allocation8 + $0x10] sm:$0xff]
        %v630 = vld [vmem:[#allocation8 + $0x18] sm:$0xff]
        %v631 = vld [vmem:[%s5] sm:$0x1]
        %v633 = vlaneseq
        %v634 = vshrl.u32 %v633, 7
        %v635 = vsub.s32 0, %v634
        %v636 = vrot.slane %v631, %v635
        %vm638 = vcmask 261120
        %v640 = vsel %vm638, %v624, 0
        %642 = vmatprep.subr.mxu0 0.0
        %643 = vmatpush1.msra.mxu0 %v627
        %644 = vmatprep.subr.mxu0 0.0
        %645 = vmatpush1.msra.mxu0 %v628
        %646 = vmatprep.subr.mxu0 0.0
        %647 = vmatpush1.msra.mxu0 %v629
        %648 = vmatprep.subr.mxu0 0.0
        %649 = vmatpush1.msra.mxu0 %v630
        %650 = vmatprep.subr.mxu0 0.0
        %651 = vmatpush1.msra.mxu0 0.0
        %652 = vmatprep.subr.mxu0 0.0
        %653 = vmatpush1.msra.mxu0 0.0
        %654 = vmatprep.subr.mxu0 0.0
        %655 = vmatpush1.msra.mxu0 0.0
        %656 = vmatprep.subr.mxu0 0.0
        %657 = vmatpush1.msra.mxu0 0.0
        %658 = vmatprep.subr.mxu0 0.0
        %659 = vmatpush1.msra.mxu0 0.0
        %660 = vmatprep.subr.mxu0 0.0
        %661 = vmatpush1.msra.mxu0 0.0
        %662 = vmatprep.subr.mxu0 0.0
        %663 = vmatpush1.msra.mxu0 0.0
        %664 = vmatprep.subr.mxu0 0.0
        %665 = vmatpush1.msra.mxu0 0.0
        %666 = vmatprep.subr.mxu0 0.0
        %667 = vmatpush1.msra.mxu0 0.0
        %668 = vmatprep.subr.mxu0 0.0
        %669 = vmatpush1.msra.mxu0 0.0
        %670 = vmatprep.subr.mxu0 0.0
        %671 = vmatpush1.msra.mxu0 0.0
        %672 = vmatprep.subr.mxu0 0.0
        %673 = vmatpush1.msra.mxu0 0.0
        %674 = vmatprep.subr.mxu0 0.0
        %675 = vmatpush1.msra.mxu0 0.0
        %676 = vmatprep.subr.mxu0 0.0
        %677 = vmatpush1.msra.mxu0 0.0
        %678 = vmatprep.subr.mxu0 0.0
        %679 = vmatpush1.msra.mxu0 0.0
        %680 = vmatprep.subr.mxu0 0.0
        %681 = vmatpush1.msra.mxu0 0.0
        %682 = vmatprep.subr.mxu0 0.0
        %683 = vmatpush1.msra.mxu0 0.0
        %684 = vmatprep.subr.mxu0 0.0
        %685 = vmatpush1.msra.mxu0 0.0
        %686 = vmatprep.subr.mxu0 0.0
        %687 = vmatpush1.msra.mxu0 0.0
        %688 = vmatprep.subr.mxu0 0.0
        %689 = vmatpush1.msra.mxu0 0.0
        %690 = vmatprep.subr.mxu0 0.0
        %691 = vmatpush1.msra.mxu0 0.0
        %692 = vmatprep.subr.mxu0 0.0
        %693 = vmatpush1.msra.mxu0 0.0
        %694 = vmatprep.subr.mxu0 0.0
        %695 = vmatpush1.msra.mxu0 0.0
        %696 = vmatprep.subr.mxu0 0.0
        %697 = vmatpush1.msra.mxu0 0.0
        %698 = vmatprep.subr.mxu0 0.0
        %699 = vmatpush1.msra.mxu0 0.0
        %700 = vmatprep.subr.mxu0 0.0
        %701 = vmatpush1.msra.mxu0 0.0
        %702 = vmatprep.subr.mxu0 0.0
        %703 = vmatpush1.msra.mxu0 0.0
        %704 = vmatprep.subr.mxu0 0.0
        %705 = vmatpush1.msra.mxu0 0.0
        %706 = vmatprep.mubr.f32.mxu0 0.0
        %707 = vmatmul.mubr.f32.gmra.mrb[0].mxu0 %v640
        %v708 = vpop.f32.mrb[0].mxu0
        %v709 = vadd.f32 %v636, %v708
        %v710 = vpop.f32.mrb[0].mxu0
        %711 = vdwg.mxu0
        %v712 = vld [vmem:[%s6] sm:$0xff]
        %v713 = vld [vmem:[%s6 + $0x8] sm:$0xff]
        %v714 = vld [vmem:[%s6 + $0x10] sm:$0xff]
        %v715 = vld [vmem:[%s6 + $0x18] sm:$0xff]
        %v716 = vld [vmem:[#allocation10] sm:$0x1]
        %v718 = vlaneseq
        %v719 = vshrl.u32 %v718, 7
        %v720 = vsub.s32 0, %v719
        %v721 = vrot.slane %v716, %v720
        %v724 = vsel %vm638, %v625, 0
        %726 = vmatprep.subr.mxu0 0.0
        %727 = vmatpush1.msra.mxu0 %v712
        %728 = vmatprep.subr.mxu0 0.0
        %729 = vmatpush1.msra.mxu0 %v713
        %730 = vmatprep.subr.mxu0 0.0
        %731 = vmatpush1.msra.mxu0 %v714
        %732 = vmatprep.subr.mxu0 0.0
        %733 = vmatpush1.msra.mxu0 %v715
        %734 = vmatprep.subr.mxu0 0.0
        %735 = vmatpush1.msra.mxu0 0.0
        %736 = vmatprep.subr.mxu0 0.0
        %737 = vmatpush1.msra.mxu0 0.0
        %738 = vmatprep.subr.mxu0 0.0
        %739 = vmatpush1.msra.mxu0 0.0
        %740 = vmatprep.subr.mxu0 0.0
        %741 = vmatpush1.msra.mxu0 0.0
        %742 = vmatprep.subr.mxu0 0.0
        %743 = vmatpush1.msra.mxu0 0.0
        %744 = vmatprep.subr.mxu0 0.0
        %745 = vmatpush1.msra.mxu0 0.0
        %746 = vmatprep.subr.mxu0 0.0
        %747 = vmatpush1.msra.mxu0 0.0
        %748 = vmatprep.subr.mxu0 0.0
        %749 = vmatpush1.msra.mxu0 0.0
        %750 = vmatprep.subr.mxu0 0.0
        %751 = vmatpush1.msra.mxu0 0.0
        %752 = vmatprep.subr.mxu0 0.0
        %753 = vmatpush1.msra.mxu0 0.0
        %754 = vmatprep.subr.mxu0 0.0
        %755 = vmatpush1.msra.mxu0 0.0
        %756 = vmatprep.subr.mxu0 0.0
        %757 = vmatpush1.msra.mxu0 0.0
        %758 = vmatprep.subr.mxu0 0.0
        %759 = vmatpush1.msra.mxu0 0.0
        %760 = vmatprep.subr.mxu0 0.0
        %761 = vmatpush1.msra.mxu0 0.0
        %762 = vmatprep.subr.mxu0 0.0
        %763 = vmatpush1.msra.mxu0 0.0
        %764 = vmatprep.subr.mxu0 0.0
        %765 = vmatpush1.msra.mxu0 0.0
        %766 = vmatprep.subr.mxu0 0.0
        %767 = vmatpush1.msra.mxu0 0.0
        %768 = vmatprep.subr.mxu0 0.0
        %769 = vmatpush1.msra.mxu0 0.0
        %770 = vmatprep.subr.mxu0 0.0
        %771 = vmatpush1.msra.mxu0 0.0
        %772 = vmatprep.subr.mxu0 0.0
        %773 = vmatpush1.msra.mxu0 0.0
        %774 = vmatprep.subr.mxu0 0.0
        %775 = vmatpush1.msra.mxu0 0.0
        %776 = vmatprep.subr.mxu0 0.0
        %777 = vmatpush1.msra.mxu0 0.0
        %778 = vmatprep.subr.mxu0 0.0
        %779 = vmatpush1.msra.mxu0 0.0
        %780 = vmatprep.subr.mxu0 0.0
        %781 = vmatpush1.msra.mxu0 0.0
        %782 = vmatprep.subr.mxu0 0.0
        %783 = vmatpush1.msra.mxu0 0.0
        %784 = vmatprep.subr.mxu0 0.0
        %785 = vmatpush1.msra.mxu0 0.0
        %786 = vmatprep.subr.mxu0 0.0
        %787 = vmatpush1.msra.mxu0 0.0
        %788 = vmatprep.subr.mxu0 0.0
        %789 = vmatpush1.msra.mxu0 0.0
        %790 = vmatprep.mubr.f32.mxu0 0.0
        %791 = vmatmul.mubr.f32.gmra.mrb[0].mxu0 %v724
        %v792 = vpop.f32.mrb[0].mxu0
        %v793 = vadd.f32 %v721, %v792
        %v794 = vpop.f32.mrb[0].mxu0
        %795 = vdwg.mxu0
        %v796 = vld [vmem:[#allocation11] sm:$0xff]
        %v797 = vld [vmem:[#allocation11 + $0x8] sm:$0xff]
        %v798 = vld [vmem:[#allocation11 + $0x10] sm:$0xff]
        %v799 = vld [vmem:[#allocation11 + $0x18] sm:$0xff]
        %v800 = vld [vmem:[#allocation13] sm:$0x1]
        %v802 = vlaneseq
        %v803 = vshrl.u32 %v802, 7
        %v804 = vsub.s32 0, %v803
        %v805 = vrot.slane %v800, %v804
        %v808 = vsel %vm638, %v626, 0
        %810 = vmatprep.subr.mxu0 0.0
        %811 = vmatpush1.msra.mxu0 %v796
        %812 = vmatprep.subr.mxu0 0.0
        %813 = vmatpush1.msra.mxu0 %v797
        %814 = vmatprep.subr.mxu0 0.0
        %815 = vmatpush1.msra.mxu0 %v798
        %816 = vmatprep.subr.mxu0 0.0
        %817 = vmatpush1.msra.mxu0 %v799
        %818 = vmatprep.subr.mxu0 0.0
        %819 = vmatpush1.msra.mxu0 0.0
        %820 = vmatprep.subr.mxu0 0.0
        %821 = vmatpush1.msra.mxu0 0.0
        %822 = vmatprep.subr.mxu0 0.0
        %823 = vmatpush1.msra.mxu0 0.0
        %824 = vmatprep.subr.mxu0 0.0
        %825 = vmatpush1.msra.mxu0 0.0
        %826 = vmatprep.subr.mxu0 0.0
        %827 = vmatpush1.msra.mxu0 0.0
        %828 = vmatprep.subr.mxu0 0.0
        %829 = vmatpush1.msra.mxu0 0.0
        %830 = vmatprep.subr.mxu0 0.0
        %831 = vmatpush1.msra.mxu0 0.0
        %832 = vmatprep.subr.mxu0 0.0
        %833 = vmatpush1.msra.mxu0 0.0
        %834 = vmatprep.subr.mxu0 0.0
        %835 = vmatpush1.msra.mxu0 0.0
        %836 = vmatprep.subr.mxu0 0.0
        %837 = vmatpush1.msra.mxu0 0.0
        %838 = vmatprep.subr.mxu0 0.0
        %839 = vmatpush1.msra.mxu0 0.0
        %840 = vmatprep.subr.mxu0 0.0
        %841 = vmatpush1.msra.mxu0 0.0
        %842 = vmatprep.subr.mxu0 0.0
        %843 = vmatpush1.msra.mxu0 0.0
        %844 = vmatprep.subr.mxu0 0.0
        %845 = vmatpush1.msra.mxu0 0.0
        %846 = vmatprep.subr.mxu0 0.0
        %847 = vmatpush1.msra.mxu0 0.0
        %848 = vmatprep.subr.mxu0 0.0
        %849 = vmatpush1.msra.mxu0 0.0
        %850 = vmatprep.subr.mxu0 0.0
        %851 = vmatpush1.msra.mxu0 0.0
        %852 = vmatprep.subr.mxu0 0.0
        %853 = vmatpush1.msra.mxu0 0.0
        %854 = vmatprep.subr.mxu0 0.0
        %855 = vmatpush1.msra.mxu0 0.0
        %856 = vmatprep.subr.mxu0 0.0
        %857 = vmatpush1.msra.mxu0 0.0
        %858 = vmatprep.subr.mxu0 0.0
        %859 = vmatpush1.msra.mxu0 0.0
        %860 = vmatprep.subr.mxu0 0.0
        %861 = vmatpush1.msra.mxu0 0.0
        %862 = vmatprep.subr.mxu0 0.0
        %863 = vmatpush1.msra.mxu0 0.0
        %864 = vmatprep.subr.mxu0 0.0
        %865 = vmatpush1.msra.mxu0 0.0
        %866 = vmatprep.subr.mxu0 0.0
        %867 = vmatpush1.msra.mxu0 0.0
        %868 = vmatprep.subr.mxu0 0.0
        %869 = vmatpush1.msra.mxu0 0.0
        %870 = vmatprep.subr.mxu0 0.0
        %871 = vmatpush1.msra.mxu0 0.0
        %872 = vmatprep.subr.mxu0 0.0
        %873 = vmatpush1.msra.mxu0 0.0
        %874 = vmatprep.mubr.f32.mxu0 0.0
        %875 = vmatmul.mubr.f32.gmra.mrb[0].mxu0 %v808
        %v876 = vpop.f32.mrb[0].mxu0
        %v877 = vadd.f32 %v805, %v876
        %v878 = vpop.f32.mrb[0].mxu0
        %879 = vdwg.mxu0
        %v880 = vld [vmem:[%s11] sm:$0x1]
        %v882 = vlaneseq
        %v883 = vshrl.u32 %v882, 7
        %v884 = vsub.s32 0, %v883
        %v885 = vrot.slane %v880, %v884
        %v887 = vadd.f32 %v885, 0.0
        %v888 = vld [vmem:[%s623] sm:$0xff]
        %vm889 = vcmp.eq.s32.totalorder %v888, 0
        %vm890 = vcmask 64512
        %v892 = vsel %vm890, %v709, 0
        %v895 = vsel %vm890, %v793, 0
        %897 = vmatprep.subr.mxu0 0.0
        %898 = vmatpush1.xpose.msra.mxu0 %v895
        %899 = vmatprep.subr.mxu0 0.0
        %900 = vmatpush1.xpose.msra.mxu0 0.0
        %901 = vmatprep.subr.mxu0 0.0
        %902 = vmatpush1.xpose.msra.mxu0 0.0
        %903 = vmatprep.subr.mxu0 0.0
        %904 = vmatpush1.xpose.msra.mxu0 0.0
        %905 = vmatprep.subr.mxu0 0.0
        %906 = vmatpush1.xpose.msra.mxu0 0.0
        %907 = vmatprep.subr.mxu0 0.0
        %908 = vmatpush1.xpose.msra.mxu0 0.0
        %909 = vmatprep.subr.mxu0 0.0
        %910 = vmatpush1.xpose.msra.mxu0 0.0
        %911 = vmatprep.subr.mxu0 0.0
        %912 = vmatpush1.xpose.msra.mxu0 0.0
        %913 = vmatprep.subr.mxu0 0.0
        %914 = vmatpush1.xpose.msra.mxu0 0.0
        %915 = vmatprep.subr.mxu0 0.0
        %916 = vmatpush1.xpose.msra.mxu0 0.0
        %917 = vmatprep.subr.mxu0 0.0
        %918 = vmatpush1.xpose.msra.mxu0 0.0
        %919 = vmatprep.subr.mxu0 0.0
        %920 = vmatpush1.xpose.msra.mxu0 0.0
        %921 = vmatprep.subr.mxu0 0.0
        %922 = vmatpush1.xpose.msra.mxu0 0.0
        %923 = vmatprep.subr.mxu0 0.0
        %924 = vmatpush1.xpose.msra.mxu0 0.0
        %925 = vmatprep.subr.mxu0 0.0
        %926 = vmatpush1.xpose.msra.mxu0 0.0
        %927 = vmatprep.subr.mxu0 0.0
        %928 = vmatpush1.xpose.msra.mxu0 0.0
        %929 = vmatprep.subr.mxu0 0.0
        %930 = vmatpush1.xpose.msra.mxu0 0.0
        %931 = vmatprep.subr.mxu0 0.0
        %932 = vmatpush1.xpose.msra.mxu0 0.0
        %933 = vmatprep.subr.mxu0 0.0
        %934 = vmatpush1.xpose.msra.mxu0 0.0
        %935 = vmatprep.subr.mxu0 0.0
        %936 = vmatpush1.xpose.msra.mxu0 0.0
        %937 = vmatprep.subr.mxu0 0.0
        %938 = vmatpush1.xpose.msra.mxu0 0.0
        %939 = vmatprep.subr.mxu0 0.0
        %940 = vmatpush1.xpose.msra.mxu0 0.0
        %941 = vmatprep.subr.mxu0 0.0
        %942 = vmatpush1.xpose.msra.mxu0 0.0
        %943 = vmatprep.subr.mxu0 0.0
        %944 = vmatpush1.xpose.msra.mxu0 0.0
        %945 = vmatprep.subr.mxu0 0.0
        %946 = vmatpush1.xpose.msra.mxu0 0.0
        %947 = vmatprep.subr.mxu0 0.0
        %948 = vmatpush1.xpose.msra.mxu0 0.0
        %949 = vmatprep.subr.mxu0 0.0
        %950 = vmatpush1.xpose.msra.mxu0 0.0
        %951 = vmatprep.subr.mxu0 0.0
        %952 = vmatpush1.xpose.msra.mxu0 0.0
        %953 = vmatprep.subr.mxu0 0.0
        %954 = vmatpush1.xpose.msra.mxu0 0.0
        %955 = vmatprep.subr.mxu0 0.0
        %956 = vmatpush1.xpose.msra.mxu0 0.0
        %957 = vmatprep.subr.mxu0 0.0
        %958 = vmatpush1.xpose.msra.mxu0 0.0
        %959 = vmatprep.subr.mxu0 0.0
        %960 = vmatpush1.xpose.msra.mxu0 0.0
        %961 = vmatprep.mubr.f32.mxu0 0.0
        %962 = vmatmul.mubr.f32.gmra.mrb[0].mxu0 %v892
        %v963 = vpop.f32.mrb[0].mxu0
        %v964 = vadd.f32 0.0, %v963
        %v965 = vpop.f32.mrb[0].mxu0
        %966 = vdwg.mxu0
        %v967 = vmul.f32 %v964, 0.35355338
        %v968 = vsel %vm889, -1e+09, %v967
        %v969 = vsel %vm890, %v968, -inf
        %970 = vmax.xlane.f32.xlu0 %v969
        %v971 = vpop.xlane.xlu0 %970
        %v972 = vsub.f32 %v968, %v971
        %v973 = vmul.f32 %v972, 1.442695
        %v974 = vpow.pop %v973
        %v975 = vsel %vm890, %v974, 0.0
        %976 = vadd.xlane.f32.xlu0 %v975
        %v977 = vpop.xlane.xlu0 %976
        %v978 = vrcp.pop %v977
        %v979 = vmul.f32 %v974, %v978
        %v980 = vadd.f32 %v979, 0.0
        %v982 = vsel %vm890, %v979, 0
        %984 = vmatprep.subr.mxu0 0.0
        %985 = vmatpush1.msra.mxu0 %v877
        %986 = vmatprep.subr.mxu0 0.0
        %987 = vmatpush1.msra.mxu0 0.0
        %988 = vmatprep.subr.mxu0 0.0
        %989 = vmatpush1.msra.mxu0 0.0
        %990 = vmatprep.subr.mxu0 0.0
        %991 = vmatpush1.msra.mxu0 0.0
        %992 = vmatprep.subr.mxu0 0.0
        %993 = vmatpush1.msra.mxu0 0.0
        %994 = vmatprep.subr.mxu0 0.0
        %995 = vmatpush1.msra.mxu0 0.0
        %996 = vmatprep.subr.mxu0 0.0
        %997 = vmatpush1.msra.mxu0 0.0
        %998 = vmatprep.subr.mxu0 0.0
        %999 = vmatpush1.msra.mxu0 0.0
        %1000 = vmatprep.subr.mxu0 0.0
        %1001 = vmatpush1.msra.mxu0 0.0
        %1002 = vmatprep.subr.mxu0 0.0
        %1003 = vmatpush1.msra.mxu0 0.0
        %1004 = vmatprep.subr.mxu0 0.0
        %1005 = vmatpush1.msra.mxu0 0.0
        %1006 = vmatprep.subr.mxu0 0.0
        %1007 = vmatpush1.msra.mxu0 0.0
        %1008 = vmatprep.subr.mxu0 0.0
        %1009 = vmatpush1.msra.mxu0 0.0
        %1010 = vmatprep.subr.mxu0 0.0
        %1011 = vmatpush1.msra.mxu0 0.0
        %1012 = vmatprep.subr.mxu0 0.0
        %1013 = vmatpush1.msra.mxu0 0.0
        %1014 = vmatprep.subr.mxu0 0.0
        %1015 = vmatpush1.msra.mxu0 0.0
        %1016 = vmatprep.subr.mxu0 0.0
        %1017 = vmatpush1.msra.mxu0 0.0
        %1018 = vmatprep.subr.mxu0 0.0
        %1019 = vmatpush1.msra.mxu0 0.0
        %1020 = vmatprep.subr.mxu0 0.0
        %1021 = vmatpush1.msra.mxu0 0.0
        %1022 = vmatprep.subr.mxu0 0.0
        %1023 = vmatpush1.msra.mxu0 0.0
        %1024 = vmatprep.subr.mxu0 0.0
        %1025 = vmatpush1.msra.mxu0 0.0
        %1026 = vmatprep.subr.mxu0 0.0
        %1027 = vmatpush1.msra.mxu0 0.0
        %1028 = vmatprep.subr.mxu0 0.0
        %1029 = vmatpush1.msra.mxu0 0.0
        %1030 = vmatprep.subr.mxu0 0.0
        %1031 = vmatpush1.msra.mxu0 0.0
        %1032 = vmatprep.subr.mxu0 0.0
        %1033 = vmatpush1.msra.mxu0 0.0
        %1034 = vmatprep.subr.mxu0 0.0
        %1035 = vmatpush1.msra.mxu0 0.0
        %1036 = vmatprep.subr.mxu0 0.0
        %1037 = vmatpush1.msra.mxu0 0.0
        %1038 = vmatprep.subr.mxu0 0.0
        %1039 = vmatpush1.msra.mxu0 0.0
        %1040 = vmatprep.subr.mxu0 0.0
        %1041 = vmatpush1.msra.mxu0 0.0
        %1042 = vmatprep.subr.mxu0 0.0
        %1043 = vmatpush1.msra.mxu0 0.0
        %1044 = vmatprep.subr.mxu0 0.0
        %1045 = vmatpush1.msra.mxu0 0.0
        %1046 = vmatprep.subr.mxu0 0.0
        %1047 = vmatpush1.msra.mxu0 0.0
        %1048 = vmatprep.mubr.f32.mxu0 0.0
        %1049 = vmatmul.mubr.f32.gmra.mrb[0].mxu0 %v982
        %v1050 = vpop.f32.mrb[0].mxu0
        %v1051 = vadd.f32 0.0, %v1050
        %v1052 = vpop.f32.mrb[0].mxu0
        %1053 = vdwg.mxu0
        %v1054 = vld [vmem:[#allocation14] sm:$0xff]
        %v1056 = vsel %vm890, %v1051, 0
        %1058 = vmatprep.subr.mxu0 0.0
        %1059 = vmatpush1.msra.mxu0 %v1054
        %1060 = vmatprep.subr.mxu0 0.0
        %1061 = vmatpush1.msra.mxu0 0.0
        %1062 = vmatprep.subr.mxu0 0.0
        %1063 = vmatpush1.msra.mxu0 0.0
        %1064 = vmatprep.subr.mxu0 0.0
        %1065 = vmatpush1.msra.mxu0 0.0
        %1066 = vmatprep.subr.mxu0 0.0
        %1067 = vmatpush1.msra.mxu0 0.0
        %1068 = vmatprep.subr.mxu0 0.0
        %1069 = vmatpush1.msra.mxu0 0.0
        %1070 = vmatprep.subr.mxu0 0.0
        %1071 = vmatpush1.msra.mxu0 0.0
        %1072 = vmatprep.subr.mxu0 0.0
        %1073 = vmatpush1.msra.mxu0 0.0
        %1074 = vmatprep.subr.mxu0 0.0
        %1075 = vmatpush1.msra.mxu0 0.0
        %1076 = vmatprep.subr.mxu0 0.0
        %1077 = vmatpush1.msra.mxu0 0.0
        %1078 = vmatprep.subr.mxu0 0.0
        %1079 = vmatpush1.msra.mxu0 0.0
        %1080 = vmatprep.subr.mxu0 0.0
        %1081 = vmatpush1.msra.mxu0 0.0
        %1082 = vmatprep.subr.mxu0 0.0
        %1083 = vmatpush1.msra.mxu0 0.0
        %1084 = vmatprep.subr.mxu0 0.0
        %1085 = vmatpush1.msra.mxu0 0.0
        %1086 = vmatprep.subr.mxu0 0.0
        %1087 = vmatpush1.msra.mxu0 0.0
        %1088 = vmatprep.subr.mxu0 0.0
        %1089 = vmatpush1.msra.mxu0 0.0
        %1090 = vmatprep.subr.mxu0 0.0
        %1091 = vmatpush1.msra.mxu0 0.0
        %1092 = vmatprep.subr.mxu0 0.0
        %1093 = vmatpush1.msra.mxu0 0.0
        %1094 = vmatprep.subr.mxu0 0.0
        %1095 = vmatpush1.msra.mxu0 0.0
        %1096 = vmatprep.subr.mxu0 0.0
        %1097 = vmatpush1.msra.mxu0 0.0
        %1098 = vmatprep.subr.mxu0 0.0
        %1099 = vmatpush1.msra.mxu0 0.0
        %1100 = vmatprep.subr.mxu0 0.0
        %1101 = vmatpush1.msra.mxu0 0.0
        %1102 = vmatprep.subr.mxu0 0.0
        %1103 = vmatpush1.msra.mxu0 0.0
        %1104 = vmatprep.subr.mxu0 0.0
        %1105 = vmatpush1.msra.mxu0 0.0
        %1106 = vmatprep.subr.mxu0 0.0
        %1107 = vmatpush1.msra.mxu0 0.0
        %1108 = vmatprep.subr.mxu0 0.0
        %1109 = vmatpush1.msra.mxu0 0.0
        %1110 = vmatprep.subr.mxu0 0.0
        %1111 = vmatpush1.msra.mxu0 0.0
        %1112 = vmatprep.subr.mxu0 0.0
        %1113 = vmatpush1.msra.mxu0 0.0
        %1114 = vmatprep.subr.mxu0 0.0
        %1115 = vmatpush1.msra.mxu0 0.0
        %1116 = vmatprep.subr.mxu0 0.0
        %1117 = vmatpush1.msra.mxu0 0.0
        %1118 = vmatprep.subr.mxu0 0.0
        %1119 = vmatpush1.msra.mxu0 0.0
        %1120 = vmatprep.subr.mxu0 0.0
        %1121 = vmatpush1.msra.mxu0 0.0
        %1122 = vmatprep.mubr.f32.mxu0 0.0
        %1123 = vmatmul.mubr.f32.gmra.mrb[0].mxu0 %v1056
        %v1124 = vpop.f32.mrb[0].mxu0
        %v1125 = vadd.f32 0.0, %v1124
        %v1126 = vpop.f32.mrb[0].mxu0
        %1127 = vdwg.mxu0
        %v1128 = vadd.f32 %v887, %v1125
        %1129 = vrot.lane.b32.xlu0 %v709, 120
        %v1130 = vpop.permute.xlu0 %1129
        %1131 = vrot.lane.b32.xlu0 %v793, 120
        %v1132 = vpop.permute.xlu0 %1131
        %v1133 = vsel %vm890, %v1130, 0
        %v1135 = vsel %vm890, %v1132, 0
        %1137 = vmatprep.subr.mxu0 0.0
        %1138 = vmatpush1.xpose.msra.mxu0 %v1135
        %1139 = vmatprep.subr.mxu0 0.0
        %1140 = vmatpush1.xpose.msra.mxu0 0.0
        %1141 = vmatprep.subr.mxu0 0.0
        %1142 = vmatpush1.xpose.msra.mxu0 0.0
        %1143 = vmatprep.subr.mxu0 0.0
        %1144 = vmatpush1.xpose.msra.mxu0 0.0
        %1145 = vmatprep.subr.mxu0 0.0
        %1146 = vmatpush1.xpose.msra.mxu0 0.0
        %1147 = vmatprep.subr.mxu0 0.0
        %1148 = vmatpush1.xpose.msra.mxu0 0.0
        %1149 = vmatprep.subr.mxu0 0.0
        %1150 = vmatpush1.xpose.msra.mxu0 0.0
        %1151 = vmatprep.subr.mxu0 0.0
        %1152 = vmatpush1.xpose.msra.mxu0 0.0
        %1153 = vmatprep.subr.mxu0 0.0
        %1154 = vmatpush1.xpose.msra.mxu0 0.0
        %1155 = vmatprep.subr.mxu0 0.0
        %1156 = vmatpush1.xpose.msra.mxu0 0.0
        %1157 = vmatprep.subr.mxu0 0.0
        %1158 = vmatpush1.xpose.msra.mxu0 0.0
        %1159 = vmatprep.subr.mxu0 0.0
        %1160 = vmatpush1.xpose.msra.mxu0 0.0
        %1161 = vmatprep.subr.mxu0 0.0
        %1162 = vmatpush1.xpose.msra.mxu0 0.0
        %1163 = vmatprep.subr.mxu0 0.0
        %1164 = vmatpush1.xpose.msra.mxu0 0.0
        %1165 = vmatprep.subr.mxu0 0.0
        %1166 = vmatpush1.xpose.msra.mxu0 0.0
        %1167 = vmatprep.subr.mxu0 0.0
        %1168 = vmatpush1.xpose.msra.mxu0 0.0
        %1169 = vmatprep.subr.mxu0 0.0
        %1170 = vmatpush1.xpose.msra.mxu0 0.0
        %1171 = vmatprep.subr.mxu0 0.0
        %1172 = vmatpush1.xpose.msra.mxu0 0.0
        %1173 = vmatprep.subr.mxu0 0.0
        %1174 = vmatpush1.xpose.msra.mxu0 0.0
        %1175 = vmatprep.subr.mxu0 0.0
        %1176 = vmatpush1.xpose.msra.mxu0 0.0
        %1177 = vmatprep.subr.mxu0 0.0
        %1178 = vmatpush1.xpose.msra.mxu0 0.0
        %1179 = vmatprep.subr.mxu0 0.0
        %1180 = vmatpush1.xpose.msra.mxu0 0.0
        %1181 = vmatprep.subr.mxu0 0.0
        %1182 = vmatpush1.xpose.msra.mxu0 0.0
        %1183 = vmatprep.subr.mxu0 0.0
        %1184 = vmatpush1.xpose.msra.mxu0 0.0
        %1185 = vmatprep.subr.mxu0 0.0
        %1186 = vmatpush1.xpose.msra.mxu0 0.0
        %1187 = vmatprep.subr.mxu0 0.0
        %1188 = vmatpush1.xpose.msra.mxu0 0.0
        %1189 = vmatprep.subr.mxu0 0.0
        %1190 = vmatpush1.xpose.msra.mxu0 0.0
        %1191 = vmatprep.subr.mxu0 0.0
        %1192 = vmatpush1.xpose.msra.mxu0 0.0
        %1193 = vmatprep.subr.mxu0 0.0
        %1194 = vmatpush1.xpose.msra.mxu0 0.0
        %1195 = vmatprep.subr.mxu0 0.0
        %1196 = vmatpush1.xpose.msra.mxu0 0.0
        %1197 = vmatprep.subr.mxu0 0.0
        %1198 = vmatpush1.xpose.msra.mxu0 0.0
        %1199 = vmatprep.subr.mxu0 0.0
        %1200 = vmatpush1.xpose.msra.mxu0 0.0
        %1201 = vmatprep.mubr.f32.mxu0 0.0
        %1202 = vmatmul.mubr.f32.gmra.mrb[0].mxu0 %v1133
        %v1203 = vpop.f32.mrb[0].mxu0
        %v1204 = vadd.f32 0.0, %v1203
        %v1205 = vpop.f32.mrb[0].mxu0
        %1206 = vdwg.mxu0
        %v1207 = vmul.f32 %v1204, 0.35355338
        %v1208 = vsel %vm889, -1e+09, %v1207
        %v1209 = vsel %vm890, %v1208, -inf
        %1210 = vmax.xlane.f32.xlu0 %v1209
        %v1211 = vpop.xlane.xlu0 %1210
        %v1212 = vsub.f32 %v1208, %v1211
        %v1213 = vmul.f32 %v1212, 1.442695
        %v1214 = vpow.pop %v1213
        %v1215 = vsel %vm890, %v1214, 0.0
        %1216 = vadd.xlane.f32.xlu0 %v1215
        %v1217 = vpop.xlane.xlu0 %1216
        %v1218 = vrcp.pop %v1217
        %v1219 = vmul.f32 %v1214, %v1218
        %v1220 = vadd.f32 %v980, %v1219
        %1222 = vrot.lane.b32.xlu0 %v877, 120
        %v1223 = vpop.permute.xlu0 %1222
        %v1226 = vsel %vm890, %v1219, 0
        %1228 = vmatprep.subr.mxu0 0.0
        %1229 = vmatpush1.msra.mxu0 %v1223
        %1230 = vmatprep.subr.mxu0 0.0
        %1231 = vmatpush1.msra.mxu0 0.0
        %1232 = vmatprep.subr.mxu0 0.0
        %1233 = vmatpush1.msra.mxu0 0.0
        %1234 = vmatprep.subr.mxu0 0.0
        %1235 = vmatpush1.msra.mxu0 0.0
        %1236 = vmatprep.subr.mxu0 0.0
        %1237 = vmatpush1.msra.mxu0 0.0
        %1238 = vmatprep.subr.mxu0 0.0
        %1239 = vmatpush1.msra.mxu0 0.0
        %1240 = vmatprep.subr.mxu0 0.0
        %1241 = vmatpush1.msra.mxu0 0.0
        %1242 = vmatprep.subr.mxu0 0.0
        %1243 = vmatpush1.msra.mxu0 0.0
        %1244 = vmatprep.subr.mxu0 0.0
        %1245 = vmatpush1.msra.mxu0 0.0
        %1246 = vmatprep.subr.mxu0 0.0
        %1247 = vmatpush1.msra.mxu0 0.0
        %1248 = vmatprep.subr.mxu0 0.0
        %1249 = vmatpush1.msra.mxu0 0.0
        %1250 = vmatprep.subr.mxu0 0.0
        %1251 = vmatpush1.msra.mxu0 0.0
        %1252 = vmatprep.subr.mxu0 0.0
        %1253 = vmatpush1.msra.mxu0 0.0
        %1254 = vmatprep.subr.mxu0 0.0
        %1255 = vmatpush1.msra.mxu0 0.0
        %1256 = vmatprep.subr.mxu0 0.0
        %1257 = vmatpush1.msra.mxu0 0.0
        %1258 = vmatprep.subr.mxu0 0.0
        %1259 = vmatpush1.msra.mxu0 0.0
        %1260 = vmatprep.subr.mxu0 0.0
        %1261 = vmatpush1.msra.mxu0 0.0
        %1262 = vmatprep.subr.mxu0 0.0
        %1263 = vmatpush1.msra.mxu0 0.0
        %1264 = vmatprep.subr.mxu0 0.0
        %1265 = vmatpush1.msra.mxu0 0.0
        %1266 = vmatprep.subr.mxu0 0.0
        %1267 = vmatpush1.msra.mxu0 0.0
        %1268 = vmatprep.subr.mxu0 0.0
        %1269 = vmatpush1.msra.mxu0 0.0
        %1270 = vmatprep.subr.mxu0 0.0
        %1271 = vmatpush1.msra.mxu0 0.0
        %1272 = vmatprep.subr.mxu0 0.0
        %1273 = vmatpush1.msra.mxu0 0.0
        %1274 = vmatprep.subr.mxu0 0.0
        %1275 = vmatpush1.msra.mxu0 0.0
        %1276 = vmatprep.subr.mxu0 0.0
        %1277 = vmatpush1.msra.mxu0 0.0
        %1278 = vmatprep.subr.mxu0 0.0
        %1279 = vmatpush1.msra.mxu0 0.0
        %1280 = vmatprep.subr.mxu0 0.0
        %1281 = vmatpush1.msra.mxu0 0.0
        %1282 = vmatprep.subr.mxu0 0.0
        %1283 = vmatpush1.msra.mxu0 0.0
        %1284 = vmatprep.subr.mxu0 0.0
        %1285 = vmatpush1.msra.mxu0 0.0
        %1286 = vmatprep.subr.mxu0 0.0
        %1287 = vmatpush1.msra.mxu0 0.0
        %1288 = vmatprep.subr.mxu0 0.0
        %1289 = vmatpush1.msra.mxu0 0.0
        %1290 = vmatprep.subr.mxu0 0.0
        %1291 = vmatpush1.msra.mxu0 0.0
        %1292 = vmatprep.mubr.f32.mxu0 0.0
        %1293 = vmatmul.mubr.f32.gmra.mrb[0].mxu0 %v1226
        %v1294 = vpop.f32.mrb[0].mxu0
        %v1295 = vadd.f32 0.0, %v1294
        %v1296 = vpop.f32.mrb[0].mxu0
        %1297 = vdwg.mxu0
        %v1298 = vld [vmem:[#allocation14 + $0x8] sm:$0xff]
        %v1300 = vsel %vm890, %v1295, 0
        %1302 = vmatprep.subr.mxu0 0.0
        %1303 = vmatpush1.msra.mxu0 %v1298
        %1304 = vmatprep.subr.mxu0 0.0
        %1305 = vmatpush1.msra.mxu0 0.0
        %1306 = vmatprep.subr.mxu0 0.0
        %1307 = vmatpush1.msra.mxu0 0.0
        %1308 = vmatprep.subr.mxu0 0.0
        %1309 = vmatpush1.msra.mxu0 0.0
        %1310 = vmatprep.subr.mxu0 0.0
        %1311 = vmatpush1.msra.mxu0 0.0
        %1312 = vmatprep.subr.mxu0 0.0
        %1313 = vmatpush1.msra.mxu0 0.0
        %1314 = vmatprep.subr.mxu0 0.0
        %1315 = vmatpush1.msra.mxu0 0.0
        %1316 = vmatprep.subr.mxu0 0.0
        %1317 = vmatpush1.msra.mxu0 0.0
        %1318 = vmatprep.subr.mxu0 0.0
        %1319 = vmatpush1.msra.mxu0 0.0
        %1320 = vmatprep.subr.mxu0 0.0
        %1321 = vmatpush1.msra.mxu0 0.0
        %1322 = vmatprep.subr.mxu0 0.0
        %1323 = vmatpush1.msra.mxu0 0.0
        %1324 = vmatprep.subr.mxu0 0.0
        %1325 = vmatpush1.msra.mxu0 0.0
        %1326 = vmatprep.subr.mxu0 0.0
        %1327 = vmatpush1.msra.mxu0 0.0
        %1328 = vmatprep.subr.mxu0 0.0
        %1329 = vmatpush1.msra.mxu0 0.0
        %1330 = vmatprep.subr.mxu0 0.0
        %1331 = vmatpush1.msra.mxu0 0.0
        %1332 = vmatprep.subr.mxu0 0.0
        %1333 = vmatpush1.msra.mxu0 0.0
        %1334 = vmatprep.subr.mxu0 0.0
        %1335 = vmatpush1.msra.mxu0 0.0
        %1336 = vmatprep.subr.mxu0 0.0
        %1337 = vmatpush1.msra.mxu0 0.0
        %1338 = vmatprep.subr.mxu0 0.0
        %1339 = vmatpush1.msra.mxu0 0.0
        %1340 = vmatprep.subr.mxu0 0.0
        %1341 = vmatpush1.msra.mxu0 0.0
        %1342 = vmatprep.subr.mxu0 0.0
        %1343 = vmatpush1.msra.mxu0 0.0
        %1344 = vmatprep.subr.mxu0 0.0
        %1345 = vmatpush1.msra.mxu0 0.0
        %1346 = vmatprep.subr.mxu0 0.0
        %1347 = vmatpush1.msra.mxu0 0.0
        %1348 = vmatprep.subr.mxu0 0.0
        %1349 = vmatpush1.msra.mxu0 0.0
        %1350 = vmatprep.subr.mxu0 0.0
        %1351 = vmatpush1.msra.mxu0 0.0
        %1352 = vmatprep.subr.mxu0 0.0
        %1353 = vmatpush1.msra.mxu0 0.0
        %1354 = vmatprep.subr.mxu0 0.0
        %1355 = vmatpush1.msra.mxu0 0.0
        %1356 = vmatprep.subr.mxu0 0.0
        %1357 = vmatpush1.msra.mxu0 0.0
        %1358 = vmatprep.subr.mxu0 0.0
        %1359 = vmatpush1.msra.mxu0 0.0
        %1360 = vmatprep.subr.mxu0 0.0
        %1361 = vmatpush1.msra.mxu0 0.0
        %1362 = vmatprep.subr.mxu0 0.0
        %1363 = vmatpush1.msra.mxu0 0.0
        %1364 = vmatprep.subr.mxu0 0.0
        %1365 = vmatpush1.msra.mxu0 0.0
        %1366 = vmatprep.mubr.f32.mxu0 0.0
        %1367 = vmatmul.mubr.f32.gmra.mrb[0].mxu0 %v1300
        %v1368 = vpop.f32.mrb[0].mxu0
        %v1369 = vadd.f32 0.0, %v1368
        %v1370 = vpop.f32.mrb[0].mxu0
        %1371 = vdwg.mxu0
        %v1372 = vadd.f32 %v1128, %v1369
        %1373 = vrot.lane.b32.xlu0 %v709, 112
        %v1374 = vpop.permute.xlu0 %1373
        %1375 = vrot.lane.b32.xlu0 %v793, 112
        %v1376 = vpop.permute.xlu0 %1375
        %v1377 = vsel %vm890, %v1374, 0
        %v1379 = vsel %vm890, %v1376, 0
        %1381 = vmatprep.subr.mxu0 0.0
        %1382 = vmatpush1.xpose.msra.mxu0 %v1379
        %1383 = vmatprep.subr.mxu0 0.0
        %1384 = vmatpush1.xpose.msra.mxu0 0.0
        %1385 = vmatprep.subr.mxu0 0.0
        %1386 = vmatpush1.xpose.msra.mxu0 0.0
        %1387 = vmatprep.subr.mxu0 0.0
        %1388 = vmatpush1.xpose.msra.mxu0 0.0
        %1389 = vmatprep.subr.mxu0 0.0
        %1390 = vmatpush1.xpose.msra.mxu0 0.0
        %1391 = vmatprep.subr.mxu0 0.0
        %1392 = vmatpush1.xpose.msra.mxu0 0.0
        %1393 = vmatprep.subr.mxu0 0.0
        %1394 = vmatpush1.xpose.msra.mxu0 0.0
        %1395 = vmatprep.subr.mxu0 0.0
        %1396 = vmatpush1.xpose.msra.mxu0 0.0
        %1397 = vmatprep.subr.mxu0 0.0
        %1398 = vmatpush1.xpose.msra.mxu0 0.0
        %1399 = vmatprep.subr.mxu0 0.0
        %1400 = vmatpush1.xpose.msra.mxu0 0.0
        %1401 = vmatprep.subr.mxu0 0.0
        %1402 = vmatpush1.xpose.msra.mxu0 0.0
        %1403 = vmatprep.subr.mxu0 0.0
        %1404 = vmatpush1.xpose.msra.mxu0 0.0
        %1405 = vmatprep.subr.mxu0 0.0
        %1406 = vmatpush1.xpose.msra.mxu0 0.0
        %1407 = vmatprep.subr.mxu0 0.0
        %1408 = vmatpush1.xpose.msra.mxu0 0.0
        %1409 = vmatprep.subr.mxu0 0.0
        %1410 = vmatpush1.xpose.msra.mxu0 0.0
        %1411 = vmatprep.subr.mxu0 0.0
        %1412 = vmatpush1.xpose.msra.mxu0 0.0
        %1413 = vmatprep.subr.mxu0 0.0
        %1414 = vmatpush1.xpose.msra.mxu0 0.0
        %1415 = vmatprep.subr.mxu0 0.0
        %1416 = vmatpush1.xpose.msra.mxu0 0.0
        %1417 = vmatprep.subr.mxu0 0.0
        %1418 = vmatpush1.xpose.msra.mxu0 0.0
        %1419 = vmatprep.subr.mxu0 0.0
        %1420 = vmatpush1.xpose.msra.mxu0 0.0
        %1421 = vmatprep.subr.mxu0 0.0
        %1422 = vmatpush1.xpose.msra.mxu0 0.0
        %1423 = vmatprep.subr.mxu0 0.0
        %1424 = vmatpush1.xpose.msra.mxu0 0.0
        %1425 = vmatprep.subr.mxu0 0.0
        %1426 = vmatpush1.xpose.msra.mxu0 0.0
        %1427 = vmatprep.subr.mxu0 0.0
        %1428 = vmatpush1.xpose.msra.mxu0 0.0
        %1429 = vmatprep.subr.mxu0 0.0
        %1430 = vmatpush1.xpose.msra.mxu0 0.0
        %1431 = vmatprep.subr.mxu0 0.0
        %1432 = vmatpush1.xpose.msra.mxu0 0.0
        %1433 = vmatprep.subr.mxu0 0.0
        %1434 = vmatpush1.xpose.msra.mxu0 0.0
        %1435 = vmatprep.subr.mxu0 0.0
        %1436 = vmatpush1.xpose.msra.mxu0 0.0
        %1437 = vmatprep.subr.mxu0 0.0
        %1438 = vmatpush1.xpose.msra.mxu0 0.0
        %1439 = vmatprep.subr.mxu0 0.0
        %1440 = vmatpush1.xpose.msra.mxu0 0.0
        %1441 = vmatprep.subr.mxu0 0.0
        %1442 = vmatpush1.xpose.msra.mxu0 0.0
        %1443 = vmatprep.subr.mxu0 0.0
        %1444 = vmatpush1.xpose.msra.mxu0 0.0
        %1445 = vmatprep.mubr.f32.mxu0 0.0
        %1446 = vmatmul.mubr.f32.gmra.mrb[0].mxu0 %v1377
        %v1447 = vpop.f32.mrb[0].mxu0
        %v1448 = vadd.f32 0.0, %v1447
        %v1449 = vpop.f32.mrb[0].mxu0
        %1450 = vdwg.mxu0
        %v1451 = vmul.f32 %v1448, 0.35355338
        %v1452 = vsel %vm889, -1e+09, %v1451
        %v1453 = vsel %vm890, %v1452, -inf
        %1454 = vmax.xlane.f32.xlu0 %v1453
        %v1455 = vpop.xlane.xlu0 %1454
        %v1456 = vsub.f32 %v1452, %v1455
        %v1457 = vmul.f32 %v1456, 1.442695
        %v1458 = vpow.pop %v1457
        %v1459 = vsel %vm890, %v1458, 0.0
        %1460 = vadd.xlane.f32.xlu0 %v1459
        %v1461 = vpop.xlane.xlu0 %1460
        %v1462 = vrcp.pop %v1461
        %v1463 = vmul.f32 %v1458, %v1462
        %v1464 = vadd.f32 %v1220, %v1463
        %1465 = vrot.lane.b32.xlu0 %v877, 112
        %v1466 = vpop.permute.xlu0 %1465
        %v1469 = vsel %vm890, %v1463, 0
        %1471 = vmatprep.subr.mxu0 0.0
        %1472 = vmatpush1.msra.mxu0 %v1466
        %1473 = vmatprep.subr.mxu0 0.0
        %1474 = vmatpush1.msra.mxu0 0.0
        %1475 = vmatprep.subr.mxu0 0.0
        %1476 = vmatpush1.msra.mxu0 0.0
        %1477 = vmatprep.subr.mxu0 0.0
        %1478 = vmatpush1.msra.mxu0 0.0
        %1479 = vmatprep.subr.mxu0 0.0
        %1480 = vmatpush1.msra.mxu0 0.0
        %1481 = vmatprep.subr.mxu0 0.0
        %1482 = vmatpush1.msra.mxu0 0.0
        %1483 = vmatprep.subr.mxu0 0.0
        %1484 = vmatpush1.msra.mxu0 0.0
        %1485 = vmatprep.subr.mxu0 0.0
        %1486 = vmatpush1.msra.mxu0 0.0
        %1487 = vmatprep.subr.mxu0 0.0
        %1488 = vmatpush1.msra.mxu0 0.0
        %1489 = vmatprep.subr.mxu0 0.0
        %1490 = vmatpush1.msra.mxu0 0.0
        %1491 = vmatprep.subr.mxu0 0.0
        %1492 = vmatpush1.msra.mxu0 0.0
        %1493 = vmatprep.subr.mxu0 0.0
        %1494 = vmatpush1.msra.mxu0 0.0
        %1495 = vmatprep.subr.mxu0 0.0
        %1496 = vmatpush1.msra.mxu0 0.0
        %1497 = vmatprep.subr.mxu0 0.0
        %1498 = vmatpush1.msra.mxu0 0.0
        %1499 = vmatprep.subr.mxu0 0.0
        %1500 = vmatpush1.msra.mxu0 0.0
        %1501 = vmatprep.subr.mxu0 0.0
        %1502 = vmatpush1.msra.mxu0 0.0
        %1503 = vmatprep.subr.mxu0 0.0
        %1504 = vmatpush1.msra.mxu0 0.0
        %1505 = vmatprep.subr.mxu0 0.0
        %1506 = vmatpush1.msra.mxu0 0.0
        %1507 = vmatprep.subr.mxu0 0.0
        %1508 = vmatpush1.msra.mxu0 0.0
        %1509 = vmatprep.subr.mxu0 0.0
        %1510 = vmatpush1.msra.mxu0 0.0
        %1511 = vmatprep.subr.mxu0 0.0
        %1512 = vmatpush1.msra.mxu0 0.0
        %1513 = vmatprep.subr.mxu0 0.0
        %1514 = vmatpush1.msra.mxu0 0.0
        %1515 = vmatprep.subr.mxu0 0.0
        %1516 = vmatpush1.msra.mxu0 0.0
        %1517 = vmatprep.subr.mxu0 0.0
        %1518 = vmatpush1.msra.mxu0 0.0
        %1519 = vmatprep.subr.mxu0 0.0
        %1520 = vmatpush1.msra.mxu0 0.0
        %1521 = vmatprep.subr.mxu0 0.0
        %1522 = vmatpush1.msra.mxu0 0.0
        %1523 = vmatprep.subr.mxu0 0.0
        %1524 = vmatpush1.msra.mxu0 0.0
        %1525 = vmatprep.subr.mxu0 0.0
        %1526 = vmatpush1.msra.mxu0 0.0
        %1527 = vmatprep.subr.mxu0 0.0
        %1528 = vmatpush1.msra.mxu0 0.0
        %1529 = vmatprep.subr.mxu0 0.0
        %1530 = vmatpush1.msra.mxu0 0.0
        %1531 = vmatprep.subr.mxu0 0.0
        %1532 = vmatpush1.msra.mxu0 0.0
        %1533 = vmatprep.subr.mxu0 0.0
        %1534 = vmatpush1.msra.mxu0 0.0
        %1535 = vmatprep.mubr.f32.mxu0 0.0
        %1536 = vmatmul.mubr.f32.gmra.mrb[0].mxu0 %v1469
        %v1537 = vpop.f32.mrb[0].mxu0
        %v1538 = vadd.f32 0.0, %v1537
        %v1539 = vpop.f32.mrb[0].mxu0
        %1540 = vdwg.mxu0
        %v1541 = vld [vmem:[#allocation14 + $0x10] sm:$0xff]
        %v1543 = vsel %vm890, %v1538, 0
        %1545 = vmatprep.subr.mxu0 0.0
        %1546 = vmatpush1.msra.mxu0 %v1541
        %1547 = vmatprep.subr.mxu0 0.0
        %1548 = vmatpush1.msra.mxu0 0.0
        %1549 = vmatprep.subr.mxu0 0.0
        %1550 = vmatpush1.msra.mxu0 0.0
        %1551 = vmatprep.subr.mxu0 0.0
        %1552 = vmatpush1.msra.mxu0 0.0
        %1553 = vmatprep.subr.mxu0 0.0
        %1554 = vmatpush1.msra.mxu0 0.0
        %1555 = vmatprep.subr.mxu0 0.0
        %1556 = vmatpush1.msra.mxu0 0.0
        %1557 = vmatprep.subr.mxu0 0.0
        %1558 = vmatpush1.msra.mxu0 0.0
        %1559 = vmatprep.subr.mxu0 0.0
        %1560 = vmatpush1.msra.mxu0 0.0
        %1561 = vmatprep.subr.mxu0 0.0
        %1562 = vmatpush1.msra.mxu0 0.0
        %1563 = vmatprep.subr.mxu0 0.0
        %1564 = vmatpush1.msra.mxu0 0.0
        %1565 = vmatprep.subr.mxu0 0.0
        %1566 = vmatpush1.msra.mxu0 0.0
        %1567 = vmatprep.subr.mxu0 0.0
        %1568 = vmatpush1.msra.mxu0 0.0
        %1569 = vmatprep.subr.mxu0 0.0
        %1570 = vmatpush1.msra.mxu0 0.0
        %1571 = vmatprep.subr.mxu0 0.0
        %1572 = vmatpush1.msra.mxu0 0.0
        %1573 = vmatprep.subr.mxu0 0.0
        %1574 = vmatpush1.msra.mxu0 0.0
        %1575 = vmatprep.subr.mxu0 0.0
        %1576 = vmatpush1.msra.mxu0 0.0
        %1577 = vmatprep.subr.mxu0 0.0
        %1578 = vmatpush1.msra.mxu0 0.0
        %1579 = vmatprep.subr.mxu0 0.0
        %1580 = vmatpush1.msra.mxu0 0.0
        %1581 = vmatprep.subr.mxu0 0.0
        %1582 = vmatpush1.msra.mxu0 0.0
        %1583 = vmatprep.subr.mxu0 0.0
        %1584 = vmatpush1.msra.mxu0 0.0
        %1585 = vmatprep.subr.mxu0 0.0
        %1586 = vmatpush1.msra.mxu0 0.0
        %1587 = vmatprep.subr.mxu0 0.0
        %1588 = vmatpush1.msra.mxu0 0.0
        %1589 = vmatprep.subr.mxu0 0.0
        %1590 = vmatpush1.msra.mxu0 0.0
        %1591 = vmatprep.subr.mxu0 0.0
        %1592 = vmatpush1.msra.mxu0 0.0
        %1593 = vmatprep.subr.mxu0 0.0
        %1594 = vmatpush1.msra.mxu0 0.0
        %1595 = vmatprep.subr.mxu0 0.0
        %1596 = vmatpush1.msra.mxu0 0.0
        %1597 = vmatprep.subr.mxu0 0.0
        %1598 = vmatpush1.msra.mxu0 0.0
        %1599 = vmatprep.subr.mxu0 0.0
        %1600 = vmatpush1.msra.mxu0 0.0
        %1601 = vmatprep.subr.mxu0 0.0
        %1602 = vmatpush1.msra.mxu0 0.0
        %1603 = vmatprep.subr.mxu0 0.0
        %1604 = vmatpush1.msra.mxu0 0.0
        %1605 = vmatprep.subr.mxu0 0.0
        %1606 = vmatpush1.msra.mxu0 0.0
        %1607 = vmatprep.subr.mxu0 0.0
        %1608 = vmatpush1.msra.mxu0 0.0
        %1609 = vmatprep.mubr.f32.mxu0 0.0
        %1610 = vmatmul.mubr.f32.gmra.mrb[0].mxu0 %v1543
        %v1611 = vpop.f32.mrb[0].mxu0
        %v1612 = vadd.f32 0.0, %v1611
        %v1613 = vpop.f32.mrb[0].mxu0
        %1614 = vdwg.mxu0
        %v1615 = vadd.f32 %v1372, %v1612
        %1616 = vrot.lane.b32.xlu0 %v709, 104
        %v1617 = vpop.permute.xlu0 %1616
        %1618 = vrot.lane.b32.xlu0 %v793, 104
        %v1619 = vpop.permute.xlu0 %1618
        %v1620 = vsel %vm890, %v1617, 0
        %v1622 = vsel %vm890, %v1619, 0
        %1624 = vmatprep.subr.mxu0 0.0
        %1625 = vmatpush1.xpose.msra.mxu0 %v1622
        %1626 = vmatprep.subr.mxu0 0.0
        %1627 = vmatpush1.xpose.msra.mxu0 0.0
        %1628 = vmatprep.subr.mxu0 0.0
        %1629 = vmatpush1.xpose.msra.mxu0 0.0
        %1630 = vmatprep.subr.mxu0 0.0
        %1631 = vmatpush1.xpose.msra.mxu0 0.0
        %1632 = vmatprep.subr.mxu0 0.0
        %1633 = vmatpush1.xpose.msra.mxu0 0.0
        %1634 = vmatprep.subr.mxu0 0.0
        %1635 = vmatpush1.xpose.msra.mxu0 0.0
        %1636 = vmatprep.subr.mxu0 0.0
        %1637 = vmatpush1.xpose.msra.mxu0 0.0
        %1638 = vmatprep.subr.mxu0 0.0
        %1639 = vmatpush1.xpose.msra.mxu0 0.0
        %1640 = vmatprep.subr.mxu0 0.0
        %1641 = vmatpush1.xpose.msra.mxu0 0.0
        %1642 = vmatprep.subr.mxu0 0.0
        %1643 = vmatpush1.xpose.msra.mxu0 0.0
        %1644 = vmatprep.subr.mxu0 0.0
        %1645 = vmatpush1.xpose.msra.mxu0 0.0
        %1646 = vmatprep.subr.mxu0 0.0
        %1647 = vmatpush1.xpose.msra.mxu0 0.0
        %1648 = vmatprep.subr.mxu0 0.0
        %1649 = vmatpush1.xpose.msra.mxu0 0.0
        %1650 = vmatprep.subr.mxu0 0.0
        %1651 = vmatpush1.xpose.msra.mxu0 0.0
        %1652 = vmatprep.subr.mxu0 0.0
        %1653 = vmatpush1.xpose.msra.mxu0 0.0
        %1654 = vmatprep.subr.mxu0 0.0
        %1655 = vmatpush1.xpose.msra.mxu0 0.0
        %1656 = vmatprep.subr.mxu0 0.0
        %1657 = vmatpush1.xpose.msra.mxu0 0.0
        %1658 = vmatprep.subr.mxu0 0.0
        %1659 = vmatpush1.xpose.msra.mxu0 0.0
        %1660 = vmatprep.subr.mxu0 0.0
        %1661 = vmatpush1.xpose.msra.mxu0 0.0
        %1662 = vmatprep.subr.mxu0 0.0
        %1663 = vmatpush1.xpose.msra.mxu0 0.0
        %1664 = vmatprep.subr.mxu0 0.0
        %1665 = vmatpush1.xpose.msra.mxu0 0.0
        %1666 = vmatprep.subr.mxu0 0.0
        %1667 = vmatpush1.xpose.msra.mxu0 0.0
        %1668 = vmatprep.subr.mxu0 0.0
        %1669 = vmatpush1.xpose.msra.mxu0 0.0
        %1670 = vmatprep.subr.mxu0 0.0
        %1671 = vmatpush1.xpose.msra.mxu0 0.0
        %1672 = vmatprep.subr.mxu0 0.0
        %1673 = vmatpush1.xpose.msra.mxu0 0.0
        %1674 = vmatprep.subr.mxu0 0.0
        %1675 = vmatpush1.xpose.msra.mxu0 0.0
        %1676 = vmatprep.subr.mxu0 0.0
        %1677 = vmatpush1.xpose.msra.mxu0 0.0
        %1678 = vmatprep.subr.mxu0 0.0
        %1679 = vmatpush1.xpose.msra.mxu0 0.0
        %1680 = vmatprep.subr.mxu0 0.0
        %1681 = vmatpush1.xpose.msra.mxu0 0.0
        %1682 = vmatprep.subr.mxu0 0.0
        %1683 = vmatpush1.xpose.msra.mxu0 0.0
        %1684 = vmatprep.subr.mxu0 0.0
        %1685 = vmatpush1.xpose.msra.mxu0 0.0
        %1686 = vmatprep.subr.mxu0 0.0
        %1687 = vmatpush1.xpose.msra.mxu0 0.0
        %1688 = vmatprep.mubr.f32.mxu0 0.0
        %1689 = vmatmul.mubr.f32.gmra.mrb[0].mxu0 %v1620
        %v1690 = vpop.f32.mrb[0].mxu0
        %v1691 = vadd.f32 0.0, %v1690
        %v1692 = vpop.f32.mrb[0].mxu0
        %1693 = vdwg.mxu0
        %v1694 = vmul.f32 %v1691, 0.35355338
        %v1695 = vsel %vm889, -1e+09, %v1694
        %v1696 = vsel %vm890, %v1695, -inf
        %1697 = vmax.xlane.f32.xlu0 %v1696
        %v1698 = vpop.xlane.xlu0 %1697
        %v1699 = vsub.f32 %v1695, %v1698
        %v1700 = vmul.f32 %v1699, 1.442695
        %v1701 = vpow.pop %v1700
        %v1702 = vsel %vm890, %v1701, 0.0
        %1703 = vadd.xlane.f32.xlu0 %v1702
        %v1704 = vpop.xlane.xlu0 %1703
        %v1705 = vrcp.pop %v1704
        %v1706 = vmul.f32 %v1701, %v1705
        %v1707 = vadd.f32 %v1464, %v1706
        %1708 = vrot.lane.b32.xlu0 %v877, 104
        %v1709 = vpop.permute.xlu0 %1708
        %v1712 = vsel %vm890, %v1706, 0
        %1714 = vmatprep.subr.mxu0 0.0
        %1715 = vmatpush1.msra.mxu0 %v1709
        %1716 = vmatprep.subr.mxu0 0.0
        %1717 = vmatpush1.msra.mxu0 0.0
        %1718 = vmatprep.subr.mxu0 0.0
        %1719 = vmatpush1.msra.mxu0 0.0
        %1720 = vmatprep.subr.mxu0 0.0
        %1721 = vmatpush1.msra.mxu0 0.0
        %1722 = vmatprep.subr.mxu0 0.0
        %1723 = vmatpush1.msra.mxu0 0.0
        %1724 = vmatprep.subr.mxu0 0.0
        %1725 = vmatpush1.msra.mxu0 0.0
        %1726 = vmatprep.subr.mxu0 0.0
        %1727 = vmatpush1.msra.mxu0 0.0
        %1728 = vmatprep.subr.mxu0 0.0
        %1729 = vmatpush1.msra.mxu0 0.0
        %1730 = vmatprep.subr.mxu0 0.0
        %1731 = vmatpush1.msra.mxu0 0.0
        %1732 = vmatprep.subr.mxu0 0.0
        %1733 = vmatpush1.msra.mxu0 0.0
        %1734 = vmatprep.subr.mxu0 0.0
        %1735 = vmatpush1.msra.mxu0 0.0
        %1736 = vmatprep.subr.mxu0 0.0
        %1737 = vmatpush1.msra.mxu0 0.0
        %1738 = vmatprep.subr.mxu0 0.0
        %1739 = vmatpush1.msra.mxu0 0.0
        %1740 = vmatprep.subr.mxu0 0.0
        %1741 = vmatpush1.msra.mxu0 0.0
        %1742 = vmatprep.subr.mxu0 0.0
        %1743 = vmatpush1.msra.mxu0 0.0
        %1744 = vmatprep.subr.mxu0 0.0
        %1745 = vmatpush1.msra.mxu0 0.0
        %1746 = vmatprep.subr.mxu0 0.0
        %1747 = vmatpush1.msra.mxu0 0.0
        %1748 = vmatprep.subr.mxu0 0.0
        %1749 = vmatpush1.msra.mxu0 0.0
        %1750 = vmatprep.subr.mxu0 0.0
        %1751 = vmatpush1.msra.mxu0 0.0
        %1752 = vmatprep.subr.mxu0 0.0
        %1753 = vmatpush1.msra.mxu0 0.0
        %1754 = vmatprep.subr.mxu0 0.0
        %1755 = vmatpush1.msra.mxu0 0.0
        %1756 = vmatprep.subr.mxu0 0.0
        %1757 = vmatpush1.msra.mxu0 0.0
        %1758 = vmatprep.subr.mxu0 0.0
        %1759 = vmatpush1.msra.mxu0 0.0
        %1760 = vmatprep.subr.mxu0 0.0
        %1761 = vmatpush1.msra.mxu0 0.0
        %1762 = vmatprep.subr.mxu0 0.0
        %1763 = vmatpush1.msra.mxu0 0.0
        %1764 = vmatprep.subr.mxu0 0.0
        %1765 = vmatpush1.msra.mxu0 0.0
        %1766 = vmatprep.subr.mxu0 0.0
        %1767 = vmatpush1.msra.mxu0 0.0
        %1768 = vmatprep.subr.mxu0 0.0
        %1769 = vmatpush1.msra.mxu0 0.0
        %1770 = vmatprep.subr.mxu0 0.0
        %1771 = vmatpush1.msra.mxu0 0.0
        %1772 = vmatprep.subr.mxu0 0.0
        %1773 = vmatpush1.msra.mxu0 0.0
        %1774 = vmatprep.subr.mxu0 0.0
        %1775 = vmatpush1.msra.mxu0 0.0
        %1776 = vmatprep.subr.mxu0 0.0
        %1777 = vmatpush1.msra.mxu0 0.0
        %1778 = vmatprep.mubr.f32.mxu0 0.0
        %1779 = vmatmul.mubr.f32.gmra.mrb[0].mxu0 %v1712
        %v1780 = vpop.f32.mrb[0].mxu0
        %v1781 = vadd.f32 0.0, %v1780
        %v1782 = vpop.f32.mrb[0].mxu0
        %1783 = vdwg.mxu0
        %v1784 = vld [vmem:[#allocation14 + $0x18] sm:$0xff]
        %v1786 = vsel %vm890, %v1781, 0
        %1788 = vmatprep.subr.mxu0 0.0
        %1789 = vmatpush1.msra.mxu0 %v1784
        %1790 = vmatprep.subr.mxu0 0.0
        %1791 = vmatpush1.msra.mxu0 0.0
        %1792 = vmatprep.subr.mxu0 0.0
        %1793 = vmatpush1.msra.mxu0 0.0
        %1794 = vmatprep.subr.mxu0 0.0
        %1795 = vmatpush1.msra.mxu0 0.0
        %1796 = vmatprep.subr.mxu0 0.0
        %1797 = vmatpush1.msra.mxu0 0.0
        %1798 = vmatprep.subr.mxu0 0.0
        %1799 = vmatpush1.msra.mxu0 0.0
        %1800 = vmatprep.subr.mxu0 0.0
        %1801 = vmatpush1.msra.mxu0 0.0
        %1802 = vmatprep.subr.mxu0 0.0
        %1803 = vmatpush1.msra.mxu0 0.0
        %1804 = vmatprep.subr.mxu0 0.0
        %1805 = vmatpush1.msra.mxu0 0.0
        %1806 = vmatprep.subr.mxu0 0.0
        %1807 = vmatpush1.msra.mxu0 0.0
        %1808 = vmatprep.subr.mxu0 0.0
        %1809 = vmatpush1.msra.mxu0 0.0
        %1810 = vmatprep.subr.mxu0 0.0
        %1811 = vmatpush1.msra.mxu0 0.0
        %1812 = vmatprep.subr.mxu0 0.0
        %1813 = vmatpush1.msra.mxu0 0.0
        %1814 = vmatprep.subr.mxu0 0.0
        %1815 = vmatpush1.msra.mxu0 0.0
        %1816 = vmatprep.subr.mxu0 0.0
        %1817 = vmatpush1.msra.mxu0 0.0
        %1818 = vmatprep.subr.mxu0 0.0
        %1819 = vmatpush1.msra.mxu0 0.0
        %1820 = vmatprep.subr.mxu0 0.0
        %1821 = vmatpush1.msra.mxu0 0.0
        %1822 = vmatprep.subr.mxu0 0.0
        %1823 = vmatpush1.msra.mxu0 0.0
        %1824 = vmatprep.subr.mxu0 0.0
        %1825 = vmatpush1.msra.mxu0 0.0
        %1826 = vmatprep.subr.mxu0 0.0
        %1827 = vmatpush1.msra.mxu0 0.0
        %1828 = vmatprep.subr.mxu0 0.0
        %1829 = vmatpush1.msra.mxu0 0.0
        %1830 = vmatprep.subr.mxu0 0.0
        %1831 = vmatpush1.msra.mxu0 0.0
        %1832 = vmatprep.subr.mxu0 0.0
        %1833 = vmatpush1.msra.mxu0 0.0
        %1834 = vmatprep.subr.mxu0 0.0
        %1835 = vmatpush1.msra.mxu0 0.0
        %1836 = vmatprep.subr.mxu0 0.0
        %1837 = vmatpush1.msra.mxu0 0.0
        %1838 = vmatprep.subr.mxu0 0.0
        %1839 = vmatpush1.msra.mxu0 0.0
        %1840 = vmatprep.subr.mxu0 0.0
        %1841 = vmatpush1.msra.mxu0 0.0
        %1842 = vmatprep.subr.mxu0 0.0
        %1843 = vmatpush1.msra.mxu0 0.0
        %1844 = vmatprep.subr.mxu0 0.0
        %1845 = vmatpush1.msra.mxu0 0.0
        %1846 = vmatprep.subr.mxu0 0.0
        %1847 = vmatpush1.msra.mxu0 0.0
        %1848 = vmatprep.subr.mxu0 0.0
        %1849 = vmatpush1.msra.mxu0 0.0
        %1850 = vmatprep.subr.mxu0 0.0
        %1851 = vmatpush1.msra.mxu0 0.0
        %1852 = vmatprep.mubr.f32.mxu0 0.0
        %1853 = vmatmul.mubr.f32.gmra.mrb[0].mxu0 %v1786
        %v1854 = vpop.f32.mrb[0].mxu0
        %v1855 = vadd.f32 0.0, %v1854
        %v1856 = vpop.f32.mrb[0].mxu0
        %1857 = vdwg.mxu0
        %v1858 = vadd.f32 %v1615, %v1855
        %1859 = vst.msk [vmem:[%s612] sm:$0xff] %vm638, %v1858
        %v1860 = vmul.f32 %v1707, 0.25
        %1861 = vst.msk [vmem:[%s619] sm:$0xff] %vm890, %v1860
        %s1862 = sand.u32 %s320, 1
        %s1863 = scalar_lea.sflag [#allocation4], %s1862
        %s1864 = sand.u32 %s320, 1
        %s1865 = smul.addr %s1864, 8
        %s1866 = scalar_lea.vmem [#allocation16], %s1865
        %s1867 = sand.u32 %s346, 1
        %s1868 = scalar_lea.sflag [#allocation18], %s1867
        %s1869 = sand.u32 %s346, 1
        %s1870 = smul.addr %s1869, 8
        %s1871 = scalar_lea.vmem [#allocation17], %s1870
        // Predicated region
        $region101: #{multi_headed_attention.1} parent=67 // pred_check
          %p1872 = pneg %p330
        $region102: #{multi_headed_attention.1} parent=67 // pred_check_branch
          %1874 = sbr.rel (%p1872) target = $region104
        $region103: #{multi_headed_attention.1} parent=67 // pred_region
          %s1876 = ssub.s32 128, 128
          %1877 = vsyncadd %s1863, %s1876
          %s1878 = smul.addr %s40, 128
          %s1879 = scalar_lea.hbm %s12, %s1878
          %s1881 = sshll.u32 %s1866, 4
          %s1882 = int_to_ptr.vmem [resolvable:$true] %s1881
          %1884 = dma.vmem_to_hbm [thread:$0]  %s1882, 128, %s1879, %s1863
        $region104: #{multi_headed_attention.1} parent=67 // pred_fallthru
          _
        // Predicated region
        $region105: #{multi_headed_attention.1} parent=67 // pred_check
          %p1885 = pneg %p356
        $region106: #{multi_headed_attention.1} parent=67 // pred_check_branch
          %1887 = sbr.rel (%p1885) target = $region108
        $region107: #{multi_headed_attention.1} parent=67 // pred_region
          %s1889 = ssub.s32 128, 128
          %1890 = vsyncadd %s1868, %s1889
          %s1891 = smul.addr %s40, 128
          %s1892 = scalar_lea.hbm %s13, %s1891
          %s1894 = sshll.u32 %s1871, 4
          %s1895 = int_to_ptr.vmem [resolvable:$true] %s1894
          %1897 = dma.vmem_to_hbm [thread:$0]  %s1895, 128, %s1892, %s1868
        $region108: #{multi_headed_attention.1} parent=67 // pred_fallthru
          _
      $region68: #{multi_headed_attention.1} parent=5 // pred_fallthru
        _
      %p1898 = scmp.le.s32.totalorder 2, %s35
      // Predicated region
      $region109: #{multi_headed_attention.1} parent=5 // pred_check
        %p1899 = pneg %p1898
      $region110: #{multi_headed_attention.1} parent=5 // pred_check_branch
        %1901 = sbr.rel (%p1899) target = $region112
      $region111: #{multi_headed_attention.1} parent=5 // pred_region
        %s1902 = ssub.s32 %s35, 2
        // Predicated region
        $region113: #{multi_headed_attention.1} parent=111 // pred_check
          %p1903 = pneg %p336
        $region114: #{multi_headed_attention.1} parent=111 // pred_check_branch
          %1905 = sbr.rel (%p1903) target = $region116
        $region115: #{multi_headed_attention.1} parent=111 // pred_region
          %s1906 = sand.u32 %s321, 1
          %s1907 = scalar_lea.sflag [#allocation4], %s1906
          %s1908 = sand.u32 %s321, 1
          %s1909 = smul.addr %s1908, 8
          %s1910 = scalar_lea.vmem [#allocation16], %s1909
          %1911 = dma.done %s1907, 128
        $region116: #{multi_headed_attention.1} parent=111 // pred_fallthru
          _
        // Predicated region
        $region117: #{multi_headed_attention.1} parent=111 // pred_check
          %p1912 = pneg %p362
        $region118: #{multi_headed_attention.1} parent=111 // pred_check_branch
          %1914 = sbr.rel (%p1912) target = $region120
        $region119: #{multi_headed_attention.1} parent=111 // pred_region
          %s1915 = sand.u32 %s347, 1
          %s1916 = scalar_lea.sflag [#allocation18], %s1915
          %s1917 = sand.u32 %s347, 1
          %s1918 = smul.addr %s1917, 8
          %s1919 = scalar_lea.vmem [#allocation17], %s1918
          %1920 = dma.done %s1916, 128
        $region120: #{multi_headed_attention.1} parent=111 // pred_fallthru
          _
      $region112: #{multi_headed_attention.1} parent=5 // pred_fallthru
        _
    $region6: #{multi_headed_attention.1} parent=1 // loop_footer
      %s39 = sadd.s32 1, %s35
    $region7: #{multi_headed_attention.1} parent=1 // loop_footer_branch
      %34 = sbr.rel target = $region3
    $region8: #{multi_headed_attention.1} parent=1 // loop_exit
      _
    %1921 = vsyncpa [#allocation3], 1
    %s1922 = scalar_lea.sflag [#allocation3], 1
    %1923 = vsyncpa %s1922, 1
    %1924 = vsyncpa [#allocation6], 1
    %s1925 = scalar_lea.sflag [#allocation6], 1
    %1926 = vsyncpa %s1925, 1
    %1927 = vsyncpa [#allocation9], 1
    %1928 = vsyncpa [#allocation12], 1
    %1929 = vsyncpa [#allocation15], 1
    %1930 = vsyncpa [#allocation4], 1
    %s1931 = scalar_lea.sflag [#allocation4], 1
    %1932 = vsyncpa %s1931, 1
    %1933 = vsyncpa [#allocation18], 1
    %s1934 = scalar_lea.sflag [#allocation18], 1
    %1935 = vsyncpa %s1934, 1

</llo_original>
